<compile_context>
chip_gen: v6e
topology: v6e:2x2x1
jax: 0.10.0
libtpu: 0.0.40
codegen_flags: <defaults>
</compile_context>

<pallas_src>
import jax
import jax.numpy as jnp
from jax.experimental import pallas as pl
from jax.experimental.pallas import tpu as pltpu

INPUT_SIZE = 4
HIDDEN = 100
H_PAD = 128            # lane-aligned hidden size (zero padding is a numerical no-op)
NUM_LAYERS = 4
OUT_FEATURES = 2
OUT_PAD = 128          # lane-dense output width (sliced back to 2 in the wrapper)
SEQ_LEN = 8


def rnn_wavefront_kernel(pre0_ref,   # (T, B, Hp)       f32  layer-0 input proj + bias
                         whh0_ref,   # (Hp, Hp)         bf16 layer-0 recurrent weight (transposed)
                         w_ref,      # (L-1, 2*Hp, Hp)  bf16 packed [W_ih; W_hh] per upper layer
                         b_ref,      # (L-1, 1, Hp)     f32  combined biases per upper layer
                         wlin_ref,   # (Hp, OUT_PAD)    f32  linear weight (transposed, padded)
                         blin_ref,   # (1, OUT_PAD)     f32  linear bias (padded)
                         out_ref):   # (B, OUT_PAD)     f32
    T, B, Hp = pre0_ref.shape
    L = w_ref.shape[0] + 1

    # Load weights once; Mosaic regalloc handles liveness/spills (weight loads
    # have no dependence on the recurrence, so they stay off the critical path).
    whh0 = whh0_ref[...]
    w_hi = [w_ref[l] for l in range(L - 1)]
    b_hi = [b_ref[l] for l in range(L - 1)]

    zero = jnp.zeros((B, Hp), jnp.float32)
    h = [zero] * L          # recurrent state per layer (kept in vregs)
    prev = [zero] * L       # previous-wavefront-step output per layer

    # Wavefront: cell (layer l, time t) runs at step s = l + t.  Both of its
    # inputs (h_l from time t-1, and the layer-(l-1) output at time t) were
    # produced at step s-1, so each step depends only on the previous step and
    # the up-to-4 matmuls inside a step are independent.
    for s in range(T + L - 1):
        new_h = list(h)
        new_prev = list(prev)
        for l in range(L):
            t = s - l
            if 0 <= t < T:
                if l == 0:
                    acc = pre0_ref[t] + jnp.dot(
                        h[0].astype(jnp.bfloat16), whh0,
                        preferred_element_type=jnp.float32)
                else:
                    # One (B, 2*Hp) x (2*Hp, Hp) matmul: [x_in | h] @ [W_ih ; W_hh]
                    inp = jnp.concatenate([prev[l - 1], h[l]],
                                          axis=-1).astype(jnp.bfloat16)
                    acc = b_hi[l - 1] + jnp.dot(
                        inp, w_hi[l - 1], preferred_element_type=jnp.float32)
                hn = jnp.maximum(acc, 0.0)
                new_h[l] = hn
                new_prev[l] = hn
        h = new_h
        prev = new_prev

    # Mean of final hidden states over layers, then the Linear head.
    h_sum = h[0]
    for l in range(1, L):
        h_sum = h_sum + h[l]
    h_mean = h_sum * (1.0 / L)
    out_ref[...] = (jnp.dot(h_mean, wlin_ref[...],
                            preferred_element_type=jnp.float32)
                    + blin_ref[...])


def prepare_params(params):
    """Pad 100->128, pack [W_ih; W_hh] per upper layer, cast matmul weights to
    bf16.  Done ONCE at init; results stay device-resident.  Padded hidden
    lanes remain exactly 0 through the whole network (zero weight cols/rows,
    zero bias, ReLU), and zero wlin rows/cols prevent any leakage."""
    pc = H_PAD - HIDDEN
    oc = OUT_PAD - OUT_FEATURES

    wih0 = jnp.pad(params["wih0"], ((0, 0), (0, pc)))                         # (I, Hp) f32
    b0 = jnp.pad(params["b0"], ((0, 0), (0, pc)))                             # (1, Hp) f32
    whh0 = jnp.pad(params["whh0"], ((0, pc), (0, pc))).astype(jnp.bfloat16)   # (Hp, Hp)

    wih = jnp.pad(params["wih"], ((0, 0), (0, pc), (0, pc)))                  # (L-1, Hp, Hp)
    whh = jnp.pad(params["whh"], ((0, 0), (0, pc), (0, pc)))                  # (L-1, Hp, Hp)
    w_hi = jnp.concatenate([wih, whh], axis=1).astype(jnp.bfloat16)           # (L-1, 2Hp, Hp)
    b_hi = jnp.pad(params["b"], ((0, 0), (0, 0), (0, pc)))                    # (L-1, 1, Hp)

    wlin = jnp.pad(params["wlin"], ((0, pc), (0, oc)))                        # (Hp, OUT_PAD)
    blin = jnp.pad(params["blin"], ((0, 0), (0, oc)))                         # (1, OUT_PAD)

    return dict(wih0=wih0, b0=b0, whh0=whh0, w_hi=w_hi, b_hi=b_hi,
                wlin=wlin, blin=blin)


def run_model(x_btI, prep):
    """x_btI: (B, T, I) float32, batch_first like the PyTorch module."""
    B, T, _ = x_btI.shape

    # Layer-0 input projection hoisted out of the kernel: no dependence on the
    # recurrence, so XLA overlaps it with the pallas_call setup / weight DMA.
    pre0 = jnp.transpose(
        jnp.dot(x_btI, prep["wih0"], preferred_element_type=jnp.float32)
        + prep["b0"],
        (1, 0, 2))                                                            # (T, B, Hp)

    L = NUM_LAYERS
    flops = (2 * T * B * H_PAD * H_PAD                     # layer-0 recurrence
             + 2 * (L - 1) * T * B * (2 * H_PAD) * H_PAD   # packed upper-layer cells
             + 2 * B * H_PAD * OUT_PAD)                    # final linear
    bytes_accessed = (4 * pre0.size + 2 * prep["whh0"].size + 2 * prep["w_hi"].size
                      + 4 * prep["b_hi"].size + 4 * prep["wlin"].size
                      + 4 * prep["blin"].size + 4 * B * OUT_PAD)

    vmem = pl.BlockSpec(memory_space=pltpu.MemorySpace.VMEM)
    out = pl.pallas_call(
        rnn_wavefront_kernel,
        out_shape=jax.ShapeDtypeStruct((B, OUT_PAD), jnp.float32),
        in_specs=[vmem] * 6,
        out_specs=vmem,
        cost_estimate=pl.CostEstimate(flops=flops, transcendentals=0,
                                      bytes_accessed=bytes_accessed),
    )(pre0, prep["whh0"], prep["w_hi"], prep["b_hi"], prep["wlin"], prep["blin"])
    return out[:, :OUT_FEATURES]


def make_params(key):
    """Deterministic init, uniform(-1/sqrt(H), 1/sqrt(H)) like PyTorch RNN/Linear.
    Weights are stored transposed (for x @ W) relative to the PyTorch layout."""
    bound = 1.0 / jnp.sqrt(jnp.float32(HIDDEN))
    ks = jax.random.split(key, 10)

    def u(k, shape):
        return jax.random.uniform(k, shape, jnp.float32, -bound, bound)

    params = {
        # layer 0
        "wih0": u(ks[0], (INPUT_SIZE, HIDDEN)),
        "whh0": u(ks[1], (HIDDEN, HIDDEN)),
        "b0":   u(ks[2], (1, HIDDEN)) + u(ks[3], (1, HIDDEN)),       # b_ih + b_hh
        # layers 1..3 stacked
        "wih":  u(ks[4], (NUM_LAYERS - 1, HIDDEN, HIDDEN)),
        "whh":  u(ks[5], (NUM_LAYERS - 1, HIDDEN, HIDDEN)),
        "b":    u(ks[6], (NUM_LAYERS - 1, 1, HIDDEN))
              + u(ks[7], (NUM_LAYERS - 1, 1, HIDDEN)),
        # final linear
        "wlin": u(ks[8], (HIDDEN, OUT_FEATURES)),
        "blin": u(ks[9], (1, OUT_FEATURES)),
    }
    return params


def reference(x_btI, params):
    """Pure-JAX f32 reference of the same forward pass (sanity check)."""
    B, T, _ = x_btI.shape
    layer_w = [(params["wih0"], params["whh0"], params["b0"])] + [
        (params["wih"][l], params["whh"][l], params["b"][l])
        for l in range(NUM_LAYERS - 1)
    ]
    inp = x_btI
    finals = []
    for (wih, whh, bb) in layer_w:
        h = jnp.zeros((B, HIDDEN), jnp.float32)
        outs = []
        for t in range(T):
            h = jnp.maximum(inp[:, t, :] @ wih + h @ whh + bb, 0.0)
            outs.append(h)
        inp = jnp.stack(outs, axis=1)
        finals.append(h)
    h_mean = jnp.mean(jnp.stack(finals, axis=0), axis=0)
    return h_mean @ params["wlin"] + params["blin"]


if __name__ == "__main__":
    key = jax.random.PRNGKey(0)
    k_x, k_p = jax.random.split(key)

    B, T = 2, SEQ_LEN
    x = jax.random.normal(k_x, (B, T, INPUT_SIZE), jnp.float32)
    params = make_params(k_p)
    prep = prepare_params(params)          # pad/pack/cast once, device-resident

    run = jax.jit(run_model)
    out = jax.block_until_ready(run(x, prep))

    ref = reference(x, params)
    assert out.shape == (B, OUT_FEATURES)
    # bf16 matmul operands (f32 accumulate) -> relaxed tolerance vs f32 reference.
    assert jnp.allclose(out, ref, atol=5e-2, rtol=5e-2), "mismatch vs JAX reference"

    print("KERNEL_OK")
</pallas_src>

<mosaic_0001>
module attributes {stable_mosaic.version = 11 : i64} {
  func.func @rnn_wavefront_kernel(%arg0: memref<8x2x128xf32, #tpu.memory_space<vmem>>, %arg1: memref<128x128xbf16, #tpu.memory_space<vmem>>, %arg2: memref<3x256x128xbf16, #tpu.memory_space<vmem>>, %arg3: memref<3x1x128xf32, #tpu.memory_space<vmem>>, %arg4: memref<128x128xf32, #tpu.memory_space<vmem>>, %arg5: memref<1x128xf32, #tpu.memory_space<vmem>>, %arg6: memref<2x128xf32, #tpu.memory_space<vmem>>) attributes {dimension_semantics = [], scalar_prefetch = 0 : i64, scratch_operands = 0 : i64, tpu.core_type = #tpu.core_type<tc>} {
    %c0 = arith.constant 0 : index
    %c0_0 = arith.constant 0 : index
    %0 = vector.load %arg1[%c0, %c0_0] : memref<128x128xbf16, #tpu.memory_space<vmem>>, vector<128x128xbf16>
    %c0_1 = arith.constant 0 : index
    %c0_2 = arith.constant 0 : index
    %c0_3 = arith.constant 0 : index
    %1 = vector.load %arg2[%c0_1, %c0_2, %c0_3] : memref<3x256x128xbf16, #tpu.memory_space<vmem>>, vector<1x256x128xbf16>
    %2 = vector.shape_cast %1 : vector<1x256x128xbf16> to vector<256x128xbf16>
    %c1 = arith.constant 1 : index
    %c0_4 = arith.constant 0 : index
    %c0_5 = arith.constant 0 : index
    %3 = vector.load %arg2[%c1, %c0_4, %c0_5] : memref<3x256x128xbf16, #tpu.memory_space<vmem>>, vector<1x256x128xbf16>
    %4 = vector.shape_cast %3 : vector<1x256x128xbf16> to vector<256x128xbf16>
    %c2 = arith.constant 2 : index
    %c0_6 = arith.constant 0 : index
    %c0_7 = arith.constant 0 : index
    %5 = vector.load %arg2[%c2, %c0_6, %c0_7] : memref<3x256x128xbf16, #tpu.memory_space<vmem>>, vector<1x256x128xbf16>
    %6 = vector.shape_cast %5 : vector<1x256x128xbf16> to vector<256x128xbf16>
    %c0_8 = arith.constant 0 : index
    %c0_9 = arith.constant 0 : index
    %c0_10 = arith.constant 0 : index
    %7 = vector.load %arg3[%c0_8, %c0_9, %c0_10] : memref<3x1x128xf32, #tpu.memory_space<vmem>>, vector<1x1x128xf32>
    %8 = vector.shape_cast %7 : vector<1x1x128xf32> to vector<1x128xf32>
    %c1_11 = arith.constant 1 : index
    %c0_12 = arith.constant 0 : index
    %c0_13 = arith.constant 0 : index
    %9 = vector.load %arg3[%c1_11, %c0_12, %c0_13] : memref<3x1x128xf32, #tpu.memory_space<vmem>>, vector<1x1x128xf32>
    %10 = vector.shape_cast %9 : vector<1x1x128xf32> to vector<1x128xf32>
    %c2_14 = arith.constant 2 : index
    %c0_15 = arith.constant 0 : index
    %c0_16 = arith.constant 0 : index
    %11 = vector.load %arg3[%c2_14, %c0_15, %c0_16] : memref<3x1x128xf32, #tpu.memory_space<vmem>>, vector<1x1x128xf32>
    %12 = vector.shape_cast %11 : vector<1x1x128xf32> to vector<1x128xf32>
    %cst = arith.constant 0.000000e+00 : f32
    %13 = vector.broadcast %cst : f32 to vector<2x128xf32>
    %c0_17 = arith.constant 0 : index
    %c0_18 = arith.constant 0 : index
    %c0_19 = arith.constant 0 : index
    %14 = vector.load %arg0[%c0_17, %c0_18, %c0_19] : memref<8x2x128xf32, #tpu.memory_space<vmem>>, vector<1x2x128xf32>
    %15 = vector.shape_cast %14 : vector<1x2x128xf32> to vector<2x128xf32>
    %16 = arith.truncf %13 : vector<2x128xf32> to vector<2x128xbf16>
    %cst_20 = arith.constant dense<0.000000e+00> : vector<2x128xf32>
    %17 = tpu.matmul %16, %0, %cst_20 {dimension_numbers = #tpu.dot_dimension_numbers<[1], [0], [0], [1], [0, 0, 1, 1], [], []>} : vector<2x128xbf16>, vector<128x128xbf16>, vector<2x128xf32> -> vector<2x128xf32>
    %18 = arith.addf %15, %17 : vector<2x128xf32>
    %cst_21 = arith.constant 0.000000e+00 : f32
    %19 = vector.broadcast %cst_21 : f32 to vector<2x128xf32>
    %20 = arith.maximumf %18, %19 : vector<2x128xf32>
    %c1_22 = arith.constant 1 : index
    %c0_23 = arith.constant 0 : index
    %c0_24 = arith.constant 0 : index
    %21 = vector.load %arg0[%c1_22, %c0_23, %c0_24] : memref<8x2x128xf32, #tpu.memory_space<vmem>>, vector<1x2x128xf32>
    %22 = vector.shape_cast %21 : vector<1x2x128xf32> to vector<2x128xf32>
    %23 = arith.truncf %20 : vector<2x128xf32> to vector<2x128xbf16>
    %cst_25 = arith.constant dense<0.000000e+00> : vector<2x128xf32>
    %24 = tpu.matmul %23, %0, %cst_25 {dimension_numbers = #tpu.dot_dimension_numbers<[1], [0], [0], [1], [0, 0, 1, 1], [], []>} : vector<2x128xbf16>, vector<128x128xbf16>, vector<2x128xf32> -> vector<2x128xf32>
    %25 = arith.addf %22, %24 : vector<2x128xf32>
    %cst_26 = arith.constant 0.000000e+00 : f32
    %26 = vector.broadcast %cst_26 : f32 to vector<2x128xf32>
    %27 = arith.maximumf %25, %26 : vector<2x128xf32>
    %28 = tpu.concatenate %20, %13 in 1 : vector<2x128xf32>, vector<2x128xf32> -> vector<2x256xf32>
    %29 = arith.truncf %28 : vector<2x256xf32> to vector<2x256xbf16>
    %cst_27 = arith.constant dense<0.000000e+00> : vector<2x128xf32>
    %30 = tpu.matmul %29, %2, %cst_27 {dimension_numbers = #tpu.dot_dimension_numbers<[1], [0], [0], [1], [0, 0, 1, 1], [], []>} : vector<2x256xbf16>, vector<256x128xbf16>, vector<2x128xf32> -> vector<2x128xf32>
    %31 = vector.broadcast %8 : vector<1x128xf32> to vector<2x128xf32>
    %32 = arith.addf %31, %30 : vector<2x128xf32>
    %cst_28 = arith.constant 0.000000e+00 : f32
    %33 = vector.broadcast %cst_28 : f32 to vector<2x128xf32>
    %34 = arith.maximumf %32, %33 : vector<2x128xf32>
    %c2_29 = arith.constant 2 : index
    %c0_30 = arith.constant 0 : index
    %c0_31 = arith.constant 0 : index
    %35 = vector.load %arg0[%c2_29, %c0_30, %c0_31] : memref<8x2x128xf32, #tpu.memory_space<vmem>>, vector<1x2x128xf32>
    %36 = vector.shape_cast %35 : vector<1x2x128xf32> to vector<2x128xf32>
    %37 = arith.truncf %27 : vector<2x128xf32> to vector<2x128xbf16>
    %cst_32 = arith.constant dense<0.000000e+00> : vector<2x128xf32>
    %38 = tpu.matmul %37, %0, %cst_32 {dimension_numbers = #tpu.dot_dimension_numbers<[1], [0], [0], [1], [0, 0, 1, 1], [], []>} : vector<2x128xbf16>, vector<128x128xbf16>, vector<2x128xf32> -> vector<2x128xf32>
    %39 = arith.addf %36, %38 : vector<2x128xf32>
    %cst_33 = arith.constant 0.000000e+00 : f32
    %40 = vector.broadcast %cst_33 : f32 to vector<2x128xf32>
    %41 = arith.maximumf %39, %40 : vector<2x128xf32>
    %42 = tpu.concatenate %27, %34 in 1 : vector<2x128xf32>, vector<2x128xf32> -> vector<2x256xf32>
    %43 = arith.truncf %42 : vector<2x256xf32> to vector<2x256xbf16>
    %cst_34 = arith.constant dense<0.000000e+00> : vector<2x128xf32>
    %44 = tpu.matmul %43, %2, %cst_34 {dimension_numbers = #tpu.dot_dimension_numbers<[1], [0], [0], [1], [0, 0, 1, 1], [], []>} : vector<2x256xbf16>, vector<256x128xbf16>, vector<2x128xf32> -> vector<2x128xf32>
    %45 = vector.broadcast %8 : vector<1x128xf32> to vector<2x128xf32>
    %46 = arith.addf %45, %44 : vector<2x128xf32>
    %cst_35 = arith.constant 0.000000e+00 : f32
    %47 = vector.broadcast %cst_35 : f32 to vector<2x128xf32>
    %48 = arith.maximumf %46, %47 : vector<2x128xf32>
    %49 = tpu.concatenate %34, %13 in 1 : vector<2x128xf32>, vector<2x128xf32> -> vector<2x256xf32>
    %50 = arith.truncf %49 : vector<2x256xf32> to vector<2x256xbf16>
    %cst_36 = arith.constant dense<0.000000e+00> : vector<2x128xf32>
    %51 = tpu.matmul %50, %4, %cst_36 {dimension_numbers = #tpu.dot_dimension_numbers<[1], [0], [0], [1], [0, 0, 1, 1], [], []>} : vector<2x256xbf16>, vector<256x128xbf16>, vector<2x128xf32> -> vector<2x128xf32>
    %52 = vector.broadcast %10 : vector<1x128xf32> to vector<2x128xf32>
    %53 = arith.addf %52, %51 : vector<2x128xf32>
    %cst_37 = arith.constant 0.000000e+00 : f32
    %54 = vector.broadcast %cst_37 : f32 to vector<2x128xf32>
    %55 = arith.maximumf %53, %54 : vector<2x128xf32>
    %c3 = arith.constant 3 : index
    %c0_38 = arith.constant 0 : index
    %c0_39 = arith.constant 0 : index
    %56 = vector.load %arg0[%c3, %c0_38, %c0_39] : memref<8x2x128xf32, #tpu.memory_space<vmem>>, vector<1x2x128xf32>
    %57 = vector.shape_cast %56 : vector<1x2x128xf32> to vector<2x128xf32>
    %58 = arith.truncf %41 : vector<2x128xf32> to vector<2x128xbf16>
    %cst_40 = arith.constant dense<0.000000e+00> : vector<2x128xf32>
    %59 = tpu.matmul %58, %0, %cst_40 {dimension_numbers = #tpu.dot_dimension_numbers<[1], [0], [0], [1], [0, 0, 1, 1], [], []>} : vector<2x128xbf16>, vector<128x128xbf16>, vector<2x128xf32> -> vector<2x128xf32>
    %60 = arith.addf %57, %59 : vector<2x128xf32>
    %cst_41 = arith.constant 0.000000e+00 : f32
    %61 = vector.broadcast %cst_41 : f32 to vector<2x128xf32>
    %62 = arith.maximumf %60, %61 : vector<2x128xf32>
    %63 = tpu.concatenate %41, %48 in 1 : vector<2x128xf32>, vector<2x128xf32> -> vector<2x256xf32>
    %64 = arith.truncf %63 : vector<2x256xf32> to vector<2x256xbf16>
    %cst_42 = arith.constant dense<0.000000e+00> : vector<2x128xf32>
    %65 = tpu.matmul %64, %2, %cst_42 {dimension_numbers = #tpu.dot_dimension_numbers<[1], [0], [0], [1], [0, 0, 1, 1], [], []>} : vector<2x256xbf16>, vector<256x128xbf16>, vector<2x128xf32> -> vector<2x128xf32>
    %66 = vector.broadcast %8 : vector<1x128xf32> to vector<2x128xf32>
    %67 = arith.addf %66, %65 : vector<2x128xf32>
    %cst_43 = arith.constant 0.000000e+00 : f32
    %68 = vector.broadcast %cst_43 : f32 to vector<2x128xf32>
    %69 = arith.maximumf %67, %68 : vector<2x128xf32>
    %70 = tpu.concatenate %48, %55 in 1 : vector<2x128xf32>, vector<2x128xf32> -> vector<2x256xf32>
    %71 = arith.truncf %70 : vector<2x256xf32> to vector<2x256xbf16>
    %cst_44 = arith.constant dense<0.000000e+00> : vector<2x128xf32>
    %72 = tpu.matmul %71, %4, %cst_44 {dimension_numbers = #tpu.dot_dimension_numbers<[1], [0], [0], [1], [0, 0, 1, 1], [], []>} : vector<2x256xbf16>, vector<256x128xbf16>, vector<2x128xf32> -> vector<2x128xf32>
    %73 = vector.broadcast %10 : vector<1x128xf32> to vector<2x128xf32>
    %74 = arith.addf %73, %72 : vector<2x128xf32>
    %cst_45 = arith.constant 0.000000e+00 : f32
    %75 = vector.broadcast %cst_45 : f32 to vector<2x128xf32>
    %76 = arith.maximumf %74, %75 : vector<2x128xf32>
    %77 = tpu.concatenate %55, %13 in 1 : vector<2x128xf32>, vector<2x128xf32> -> vector<2x256xf32>
    %78 = arith.truncf %77 : vector<2x256xf32> to vector<2x256xbf16>
    %cst_46 = arith.constant dense<0.000000e+00> : vector<2x128xf32>
    %79 = tpu.matmul %78, %6, %cst_46 {dimension_numbers = #tpu.dot_dimension_numbers<[1], [0], [0], [1], [0, 0, 1, 1], [], []>} : vector<2x256xbf16>, vector<256x128xbf16>, vector<2x128xf32> -> vector<2x128xf32>
    %80 = vector.broadcast %12 : vector<1x128xf32> to vector<2x128xf32>
    %81 = arith.addf %80, %79 : vector<2x128xf32>
    %cst_47 = arith.constant 0.000000e+00 : f32
    %82 = vector.broadcast %cst_47 : f32 to vector<2x128xf32>
    %83 = arith.maximumf %81, %82 : vector<2x128xf32>
    %c4 = arith.constant 4 : index
    %c0_48 = arith.constant 0 : index
    %c0_49 = arith.constant 0 : index
    %84 = vector.load %arg0[%c4, %c0_48, %c0_49] : memref<8x2x128xf32, #tpu.memory_space<vmem>>, vector<1x2x128xf32>
    %85 = vector.shape_cast %84 : vector<1x2x128xf32> to vector<2x128xf32>
    %86 = arith.truncf %62 : vector<2x128xf32> to vector<2x128xbf16>
    %cst_50 = arith.constant dense<0.000000e+00> : vector<2x128xf32>
    %87 = tpu.matmul %86, %0, %cst_50 {dimension_numbers = #tpu.dot_dimension_numbers<[1], [0], [0], [1], [0, 0, 1, 1], [], []>} : vector<2x128xbf16>, vector<128x128xbf16>, vector<2x128xf32> -> vector<2x128xf32>
    %88 = arith.addf %85, %87 : vector<2x128xf32>
    %cst_51 = arith.constant 0.000000e+00 : f32
    %89 = vector.broadcast %cst_51 : f32 to vector<2x128xf32>
    %90 = arith.maximumf %88, %89 : vector<2x128xf32>
    %91 = tpu.concatenate %62, %69 in 1 : vector<2x128xf32>, vector<2x128xf32> -> vector<2x256xf32>
    %92 = arith.truncf %91 : vector<2x256xf32> to vector<2x256xbf16>
    %cst_52 = arith.constant dense<0.000000e+00> : vector<2x128xf32>
    %93 = tpu.matmul %92, %2, %cst_52 {dimension_numbers = #tpu.dot_dimension_numbers<[1], [0], [0], [1], [0, 0, 1, 1], [], []>} : vector<2x256xbf16>, vector<256x128xbf16>, vector<2x128xf32> -> vector<2x128xf32>
    %94 = vector.broadcast %8 : vector<1x128xf32> to vector<2x128xf32>
    %95 = arith.addf %94, %93 : vector<2x128xf32>
    %cst_53 = arith.constant 0.000000e+00 : f32
    %96 = vector.broadcast %cst_53 : f32 to vector<2x128xf32>
    %97 = arith.maximumf %95, %96 : vector<2x128xf32>
    %98 = tpu.concatenate %69, %76 in 1 : vector<2x128xf32>, vector<2x128xf32> -> vector<2x256xf32>
    %99 = arith.truncf %98 : vector<2x256xf32> to vector<2x256xbf16>
    %cst_54 = arith.constant dense<0.000000e+00> : vector<2x128xf32>
    %100 = tpu.matmul %99, %4, %cst_54 {dimension_numbers = #tpu.dot_dimension_numbers<[1], [0], [0], [1], [0, 0, 1, 1], [], []>} : vector<2x256xbf16>, vector<256x128xbf16>, vector<2x128xf32> -> vector<2x128xf32>
    %101 = vector.broadcast %10 : vector<1x128xf32> to vector<2x128xf32>
    %102 = arith.addf %101, %100 : vector<2x128xf32>
    %cst_55 = arith.constant 0.000000e+00 : f32
    %103 = vector.broadcast %cst_55 : f32 to vector<2x128xf32>
    %104 = arith.maximumf %102, %103 : vector<2x128xf32>
    %105 = tpu.concatenate %76, %83 in 1 : vector<2x128xf32>, vector<2x128xf32> -> vector<2x256xf32>
    %106 = arith.truncf %105 : vector<2x256xf32> to vector<2x256xbf16>
    %cst_56 = arith.constant dense<0.000000e+00> : vector<2x128xf32>
    %107 = tpu.matmul %106, %6, %cst_56 {dimension_numbers = #tpu.dot_dimension_numbers<[1], [0], [0], [1], [0, 0, 1, 1], [], []>} : vector<2x256xbf16>, vector<256x128xbf16>, vector<2x128xf32> -> vector<2x128xf32>
    %108 = vector.broadcast %12 : vector<1x128xf32> to vector<2x128xf32>
    %109 = arith.addf %108, %107 : vector<2x128xf32>
    %cst_57 = arith.constant 0.000000e+00 : f32
    %110 = vector.broadcast %cst_57 : f32 to vector<2x128xf32>
    %111 = arith.maximumf %109, %110 : vector<2x128xf32>
    %c5 = arith.constant 5 : index
    %c0_58 = arith.constant 0 : index
    %c0_59 = arith.constant 0 : index
    %112 = vector.load %arg0[%c5, %c0_58, %c0_59] : memref<8x2x128xf32, #tpu.memory_space<vmem>>, vector<1x2x128xf32>
    %113 = vector.shape_cast %112 : vector<1x2x128xf32> to vector<2x128xf32>
    %114 = arith.truncf %90 : vector<2x128xf32> to vector<2x128xbf16>
    %cst_60 = arith.constant dense<0.000000e+00> : vector<2x128xf32>
    %115 = tpu.matmul %114, %0, %cst_60 {dimension_numbers = #tpu.dot_dimension_numbers<[1], [0], [0], [1], [0, 0, 1, 1], [], []>} : vector<2x128xbf16>, vector<128x128xbf16>, vector<2x128xf32> -> vector<2x128xf32>
    %116 = arith.addf %113, %115 : vector<2x128xf32>
    %cst_61 = arith.constant 0.000000e+00 : f32
    %117 = vector.broadcast %cst_61 : f32 to vector<2x128xf32>
    %118 = arith.maximumf %116, %117 : vector<2x128xf32>
    %119 = tpu.concatenate %90, %97 in 1 : vector<2x128xf32>, vector<2x128xf32> -> vector<2x256xf32>
    %120 = arith.truncf %119 : vector<2x256xf32> to vector<2x256xbf16>
    %cst_62 = arith.constant dense<0.000000e+00> : vector<2x128xf32>
    %121 = tpu.matmul %120, %2, %cst_62 {dimension_numbers = #tpu.dot_dimension_numbers<[1], [0], [0], [1], [0, 0, 1, 1], [], []>} : vector<2x256xbf16>, vector<256x128xbf16>, vector<2x128xf32> -> vector<2x128xf32>
    %122 = vector.broadcast %8 : vector<1x128xf32> to vector<2x128xf32>
    %123 = arith.addf %122, %121 : vector<2x128xf32>
    %cst_63 = arith.constant 0.000000e+00 : f32
    %124 = vector.broadcast %cst_63 : f32 to vector<2x128xf32>
    %125 = arith.maximumf %123, %124 : vector<2x128xf32>
    %126 = tpu.concatenate %97, %104 in 1 : vector<2x128xf32>, vector<2x128xf32> -> vector<2x256xf32>
    %127 = arith.truncf %126 : vector<2x256xf32> to vector<2x256xbf16>
    %cst_64 = arith.constant dense<0.000000e+00> : vector<2x128xf32>
    %128 = tpu.matmul %127, %4, %cst_64 {dimension_numbers = #tpu.dot_dimension_numbers<[1], [0], [0], [1], [0, 0, 1, 1], [], []>} : vector<2x256xbf16>, vector<256x128xbf16>, vector<2x128xf32> -> vector<2x128xf32>
    %129 = vector.broadcast %10 : vector<1x128xf32> to vector<2x128xf32>
    %130 = arith.addf %129, %128 : vector<2x128xf32>
    %cst_65 = arith.constant 0.000000e+00 : f32
    %131 = vector.broadcast %cst_65 : f32 to vector<2x128xf32>
    %132 = arith.maximumf %130, %131 : vector<2x128xf32>
    %133 = tpu.concatenate %104, %111 in 1 : vector<2x128xf32>, vector<2x128xf32> -> vector<2x256xf32>
    %134 = arith.truncf %133 : vector<2x256xf32> to vector<2x256xbf16>
    %cst_66 = arith.constant dense<0.000000e+00> : vector<2x128xf32>
    %135 = tpu.matmul %134, %6, %cst_66 {dimension_numbers = #tpu.dot_dimension_numbers<[1], [0], [0], [1], [0, 0, 1, 1], [], []>} : vector<2x256xbf16>, vector<256x128xbf16>, vector<2x128xf32> -> vector<2x128xf32>
    %136 = vector.broadcast %12 : vector<1x128xf32> to vector<2x128xf32>
    %137 = arith.addf %136, %135 : vector<2x128xf32>
    %cst_67 = arith.constant 0.000000e+00 : f32
    %138 = vector.broadcast %cst_67 : f32 to vector<2x128xf32>
    %139 = arith.maximumf %137, %138 : vector<2x128xf32>
    %c6 = arith.constant 6 : index
    %c0_68 = arith.constant 0 : index
    %c0_69 = arith.constant 0 : index
    %140 = vector.load %arg0[%c6, %c0_68, %c0_69] : memref<8x2x128xf32, #tpu.memory_space<vmem>>, vector<1x2x128xf32>
    %141 = vector.shape_cast %140 : vector<1x2x128xf32> to vector<2x128xf32>
    %142 = arith.truncf %118 : vector<2x128xf32> to vector<2x128xbf16>
    %cst_70 = arith.constant dense<0.000000e+00> : vector<2x128xf32>
    %143 = tpu.matmul %142, %0, %cst_70 {dimension_numbers = #tpu.dot_dimension_numbers<[1], [0], [0], [1], [0, 0, 1, 1], [], []>} : vector<2x128xbf16>, vector<128x128xbf16>, vector<2x128xf32> -> vector<2x128xf32>
    %144 = arith.addf %141, %143 : vector<2x128xf32>
    %cst_71 = arith.constant 0.000000e+00 : f32
    %145 = vector.broadcast %cst_71 : f32 to vector<2x128xf32>
    %146 = arith.maximumf %144, %145 : vector<2x128xf32>
    %147 = tpu.concatenate %118, %125 in 1 : vector<2x128xf32>, vector<2x128xf32> -> vector<2x256xf32>
    %148 = arith.truncf %147 : vector<2x256xf32> to vector<2x256xbf16>
    %cst_72 = arith.constant dense<0.000000e+00> : vector<2x128xf32>
    %149 = tpu.matmul %148, %2, %cst_72 {dimension_numbers = #tpu.dot_dimension_numbers<[1], [0], [0], [1], [0, 0, 1, 1], [], []>} : vector<2x256xbf16>, vector<256x128xbf16>, vector<2x128xf32> -> vector<2x128xf32>
    %150 = vector.broadcast %8 : vector<1x128xf32> to vector<2x128xf32>
    %151 = arith.addf %150, %149 : vector<2x128xf32>
    %cst_73 = arith.constant 0.000000e+00 : f32
    %152 = vector.broadcast %cst_73 : f32 to vector<2x128xf32>
    %153 = arith.maximumf %151, %152 : vector<2x128xf32>
    %154 = tpu.concatenate %125, %132 in 1 : vector<2x128xf32>, vector<2x128xf32> -> vector<2x256xf32>
    %155 = arith.truncf %154 : vector<2x256xf32> to vector<2x256xbf16>
    %cst_74 = arith.constant dense<0.000000e+00> : vector<2x128xf32>
    %156 = tpu.matmul %155, %4, %cst_74 {dimension_numbers = #tpu.dot_dimension_numbers<[1], [0], [0], [1], [0, 0, 1, 1], [], []>} : vector<2x256xbf16>, vector<256x128xbf16>, vector<2x128xf32> -> vector<2x128xf32>
    %157 = vector.broadcast %10 : vector<1x128xf32> to vector<2x128xf32>
    %158 = arith.addf %157, %156 : vector<2x128xf32>
    %cst_75 = arith.constant 0.000000e+00 : f32
    %159 = vector.broadcast %cst_75 : f32 to vector<2x128xf32>
    %160 = arith.maximumf %158, %159 : vector<2x128xf32>
    %161 = tpu.concatenate %132, %139 in 1 : vector<2x128xf32>, vector<2x128xf32> -> vector<2x256xf32>
    %162 = arith.truncf %161 : vector<2x256xf32> to vector<2x256xbf16>
    %cst_76 = arith.constant dense<0.000000e+00> : vector<2x128xf32>
    %163 = tpu.matmul %162, %6, %cst_76 {dimension_numbers = #tpu.dot_dimension_numbers<[1], [0], [0], [1], [0, 0, 1, 1], [], []>} : vector<2x256xbf16>, vector<256x128xbf16>, vector<2x128xf32> -> vector<2x128xf32>
    %164 = vector.broadcast %12 : vector<1x128xf32> to vector<2x128xf32>
    %165 = arith.addf %164, %163 : vector<2x128xf32>
    %cst_77 = arith.constant 0.000000e+00 : f32
    %166 = vector.broadcast %cst_77 : f32 to vector<2x128xf32>
    %167 = arith.maximumf %165, %166 : vector<2x128xf32>
    %c7 = arith.constant 7 : index
    %c0_78 = arith.constant 0 : index
    %c0_79 = arith.constant 0 : index
    %168 = vector.load %arg0[%c7, %c0_78, %c0_79] : memref<8x2x128xf32, #tpu.memory_space<vmem>>, vector<1x2x128xf32>
    %169 = vector.shape_cast %168 : vector<1x2x128xf32> to vector<2x128xf32>
    %170 = arith.truncf %146 : vector<2x128xf32> to vector<2x128xbf16>
    %cst_80 = arith.constant dense<0.000000e+00> : vector<2x128xf32>
    %171 = tpu.matmul %170, %0, %cst_80 {dimension_numbers = #tpu.dot_dimension_numbers<[1], [0], [0], [1], [0, 0, 1, 1], [], []>} : vector<2x128xbf16>, vector<128x128xbf16>, vector<2x128xf32> -> vector<2x128xf32>
    %172 = arith.addf %169, %171 : vector<2x128xf32>
    %cst_81 = arith.constant 0.000000e+00 : f32
    %173 = vector.broadcast %cst_81 : f32 to vector<2x128xf32>
    %174 = arith.maximumf %172, %173 : vector<2x128xf32>
    %175 = tpu.concatenate %146, %153 in 1 : vector<2x128xf32>, vector<2x128xf32> -> vector<2x256xf32>
    %176 = arith.truncf %175 : vector<2x256xf32> to vector<2x256xbf16>
    %cst_82 = arith.constant dense<0.000000e+00> : vector<2x128xf32>
    %177 = tpu.matmul %176, %2, %cst_82 {dimension_numbers = #tpu.dot_dimension_numbers<[1], [0], [0], [1], [0, 0, 1, 1], [], []>} : vector<2x256xbf16>, vector<256x128xbf16>, vector<2x128xf32> -> vector<2x128xf32>
    %178 = vector.broadcast %8 : vector<1x128xf32> to vector<2x128xf32>
    %179 = arith.addf %178, %177 : vector<2x128xf32>
    %cst_83 = arith.constant 0.000000e+00 : f32
    %180 = vector.broadcast %cst_83 : f32 to vector<2x128xf32>
    %181 = arith.maximumf %179, %180 : vector<2x128xf32>
    %182 = tpu.concatenate %153, %160 in 1 : vector<2x128xf32>, vector<2x128xf32> -> vector<2x256xf32>
    %183 = arith.truncf %182 : vector<2x256xf32> to vector<2x256xbf16>
    %cst_84 = arith.constant dense<0.000000e+00> : vector<2x128xf32>
    %184 = tpu.matmul %183, %4, %cst_84 {dimension_numbers = #tpu.dot_dimension_numbers<[1], [0], [0], [1], [0, 0, 1, 1], [], []>} : vector<2x256xbf16>, vector<256x128xbf16>, vector<2x128xf32> -> vector<2x128xf32>
    %185 = vector.broadcast %10 : vector<1x128xf32> to vector<2x128xf32>
    %186 = arith.addf %185, %184 : vector<2x128xf32>
    %cst_85 = arith.constant 0.000000e+00 : f32
    %187 = vector.broadcast %cst_85 : f32 to vector<2x128xf32>
    %188 = arith.maximumf %186, %187 : vector<2x128xf32>
    %189 = tpu.concatenate %160, %167 in 1 : vector<2x128xf32>, vector<2x128xf32> -> vector<2x256xf32>
    %190 = arith.truncf %189 : vector<2x256xf32> to vector<2x256xbf16>
    %cst_86 = arith.constant dense<0.000000e+00> : vector<2x128xf32>
    %191 = tpu.matmul %190, %6, %cst_86 {dimension_numbers = #tpu.dot_dimension_numbers<[1], [0], [0], [1], [0, 0, 1, 1], [], []>} : vector<2x256xbf16>, vector<256x128xbf16>, vector<2x128xf32> -> vector<2x128xf32>
    %192 = vector.broadcast %12 : vector<1x128xf32> to vector<2x128xf32>
    %193 = arith.addf %192, %191 : vector<2x128xf32>
    %cst_87 = arith.constant 0.000000e+00 : f32
    %194 = vector.broadcast %cst_87 : f32 to vector<2x128xf32>
    %195 = arith.maximumf %193, %194 : vector<2x128xf32>
    %196 = tpu.concatenate %174, %181 in 1 : vector<2x128xf32>, vector<2x128xf32> -> vector<2x256xf32>
    %197 = arith.truncf %196 : vector<2x256xf32> to vector<2x256xbf16>
    %cst_88 = arith.constant dense<0.000000e+00> : vector<2x128xf32>
    %198 = tpu.matmul %197, %2, %cst_88 {dimension_numbers = #tpu.dot_dimension_numbers<[1], [0], [0], [1], [0, 0, 1, 1], [], []>} : vector<2x256xbf16>, vector<256x128xbf16>, vector<2x128xf32> -> vector<2x128xf32>
    %199 = vector.broadcast %8 : vector<1x128xf32> to vector<2x128xf32>
    %200 = arith.addf %199, %198 : vector<2x128xf32>
    %cst_89 = arith.constant 0.000000e+00 : f32
    %201 = vector.broadcast %cst_89 : f32 to vector<2x128xf32>
    %202 = arith.maximumf %200, %201 : vector<2x128xf32>
    %203 = tpu.concatenate %181, %188 in 1 : vector<2x128xf32>, vector<2x128xf32> -> vector<2x256xf32>
    %204 = arith.truncf %203 : vector<2x256xf32> to vector<2x256xbf16>
    %cst_90 = arith.constant dense<0.000000e+00> : vector<2x128xf32>
    %205 = tpu.matmul %204, %4, %cst_90 {dimension_numbers = #tpu.dot_dimension_numbers<[1], [0], [0], [1], [0, 0, 1, 1], [], []>} : vector<2x256xbf16>, vector<256x128xbf16>, vector<2x128xf32> -> vector<2x128xf32>
    %206 = vector.broadcast %10 : vector<1x128xf32> to vector<2x128xf32>
    %207 = arith.addf %206, %205 : vector<2x128xf32>
    %cst_91 = arith.constant 0.000000e+00 : f32
    %208 = vector.broadcast %cst_91 : f32 to vector<2x128xf32>
    %209 = arith.maximumf %207, %208 : vector<2x128xf32>
    %210 = tpu.concatenate %188, %195 in 1 : vector<2x128xf32>, vector<2x128xf32> -> vector<2x256xf32>
    %211 = arith.truncf %210 : vector<2x256xf32> to vector<2x256xbf16>
    %cst_92 = arith.constant dense<0.000000e+00> : vector<2x128xf32>
    %212 = tpu.matmul %211, %6, %cst_92 {dimension_numbers = #tpu.dot_dimension_numbers<[1], [0], [0], [1], [0, 0, 1, 1], [], []>} : vector<2x256xbf16>, vector<256x128xbf16>, vector<2x128xf32> -> vector<2x128xf32>
    %213 = vector.broadcast %12 : vector<1x128xf32> to vector<2x128xf32>
    %214 = arith.addf %213, %212 : vector<2x128xf32>
    %cst_93 = arith.constant 0.000000e+00 : f32
    %215 = vector.broadcast %cst_93 : f32 to vector<2x128xf32>
    %216 = arith.maximumf %214, %215 : vector<2x128xf32>
    %217 = tpu.concatenate %202, %209 in 1 : vector<2x128xf32>, vector<2x128xf32> -> vector<2x256xf32>
    %218 = arith.truncf %217 : vector<2x256xf32> to vector<2x256xbf16>
    %cst_94 = arith.constant dense<0.000000e+00> : vector<2x128xf32>
    %219 = tpu.matmul %218, %4, %cst_94 {dimension_numbers = #tpu.dot_dimension_numbers<[1], [0], [0], [1], [0, 0, 1, 1], [], []>} : vector<2x256xbf16>, vector<256x128xbf16>, vector<2x128xf32> -> vector<2x128xf32>
    %220 = vector.broadcast %10 : vector<1x128xf32> to vector<2x128xf32>
    %221 = arith.addf %220, %219 : vector<2x128xf32>
    %cst_95 = arith.constant 0.000000e+00 : f32
    %222 = vector.broadcast %cst_95 : f32 to vector<2x128xf32>
    %223 = arith.maximumf %221, %222 : vector<2x128xf32>
    %224 = tpu.concatenate %209, %216 in 1 : vector<2x128xf32>, vector<2x128xf32> -> vector<2x256xf32>
    %225 = arith.truncf %224 : vector<2x256xf32> to vector<2x256xbf16>
    %cst_96 = arith.constant dense<0.000000e+00> : vector<2x128xf32>
    %226 = tpu.matmul %225, %6, %cst_96 {dimension_numbers = #tpu.dot_dimension_numbers<[1], [0], [0], [1], [0, 0, 1, 1], [], []>} : vector<2x256xbf16>, vector<256x128xbf16>, vector<2x128xf32> -> vector<2x128xf32>
    %227 = vector.broadcast %12 : vector<1x128xf32> to vector<2x128xf32>
    %228 = arith.addf %227, %226 : vector<2x128xf32>
    %cst_97 = arith.constant 0.000000e+00 : f32
    %229 = vector.broadcast %cst_97 : f32 to vector<2x128xf32>
    %230 = arith.maximumf %228, %229 : vector<2x128xf32>
    %231 = tpu.concatenate %223, %230 in 1 : vector<2x128xf32>, vector<2x128xf32> -> vector<2x256xf32>
    %232 = arith.truncf %231 : vector<2x256xf32> to vector<2x256xbf16>
    %cst_98 = arith.constant dense<0.000000e+00> : vector<2x128xf32>
    %233 = tpu.matmul %232, %6, %cst_98 {dimension_numbers = #tpu.dot_dimension_numbers<[1], [0], [0], [1], [0, 0, 1, 1], [], []>} : vector<2x256xbf16>, vector<256x128xbf16>, vector<2x128xf32> -> vector<2x128xf32>
    %234 = vector.broadcast %12 : vector<1x128xf32> to vector<2x128xf32>
    %235 = arith.addf %234, %233 : vector<2x128xf32>
    %cst_99 = arith.constant 0.000000e+00 : f32
    %236 = vector.broadcast %cst_99 : f32 to vector<2x128xf32>
    %237 = arith.maximumf %235, %236 : vector<2x128xf32>
    %238 = arith.addf %174, %202 : vector<2x128xf32>
    %239 = arith.addf %238, %223 : vector<2x128xf32>
    %240 = arith.addf %239, %237 : vector<2x128xf32>
    %cst_100 = arith.constant 2.500000e-01 : f32
    %241 = vector.broadcast %cst_100 : f32 to vector<2x128xf32>
    %242 = arith.mulf %240, %241 : vector<2x128xf32>
    %c0_101 = arith.constant 0 : index
    %c0_102 = arith.constant 0 : index
    %243 = vector.load %arg4[%c0_101, %c0_102] : memref<128x128xf32, #tpu.memory_space<vmem>>, vector<128x128xf32>
    %cst_103 = arith.constant dense<0.000000e+00> : vector<2x128xf32>
    %244 = tpu.matmul %242, %243, %cst_103 {dimension_numbers = #tpu.dot_dimension_numbers<[1], [0], [0], [1], [0, 0, 1, 1], [], []>} : vector<2x128xf32>, vector<128x128xf32>, vector<2x128xf32> -> vector<2x128xf32>
    %c0_104 = arith.constant 0 : index
    %c0_105 = arith.constant 0 : index
    %245 = vector.load %arg5[%c0_104, %c0_105] : memref<1x128xf32, #tpu.memory_space<vmem>>, vector<1x128xf32>
    %246 = vector.broadcast %245 : vector<1x128xf32> to vector<2x128xf32>
    %247 = arith.addf %244, %246 : vector<2x128xf32>
    %c0_106 = arith.constant 0 : index
    %c0_107 = arith.constant 0 : index
    %248 = vector.load %arg6[%c0_106, %c0_107] : memref<2x128xf32, #tpu.memory_space<vmem>>, vector<2x128xf32>
    tpu.vector_store %arg6[%c0_106, %c0_107], %247 {strides = array<i32>} : memref<2x128xf32, #tpu.memory_space<vmem>>, vector<2x128xf32>,
    return
  }
}

</mosaic_0001>

<llo_original>
// kernel: run_model.1
$region0: #{run_model.1}
  #allocation0 [shape = 'u32[]', space=smem, size = 0x4, offset = 0x4, fixed_abs, tag = 'smem constant byte address 0x4 - core index']
  #allocation1 [shape = 'u32[144,128]{1,0:T(1,128)}', space=vmem, size = 0x12000, scoped, tag = 'internal scratch']
  %s0 = inlined_call_operand.vmem [shape: f32[8,2,128], index: 0, kind: input, shape index: {}]
  %s1 = inlined_call_operand.vmem [shape: bf16[128,128], index: 1, kind: input, shape index: {}]
  %s2 = inlined_call_operand.hbm [shape: bf16[3,256,128], index: 2, kind: input, shape index: {}]
  %s3 = inlined_call_operand.vmem [shape: f32[3,1,128], index: 3, kind: input, shape index: {}]
  %s4 = inlined_call_operand.hbm [shape: f32[128,128], index: 4, kind: input, shape index: {}]
  %s5 = inlined_call_operand.vmem [shape: f32[1,128], index: 5, kind: input, shape index: {}]
  %s6 = inlined_call_operand.hbm [shape: f32[2,128], index: 6, kind: output, shape index: {}]
  %s7 = sld [smem:[#allocation0]]
  $region42: #{run_model.1} parent=0
    _
  %s9 = ssub.s32 1, %s7
  %s10 = scalar_select 0, %s9, %s7
  $region1: #{run_model.1} parent=0
    #allocation2 [shape = 'u8[196608]{0}', space=vmem, size = 0x30000, scoped, tag = 'input window, operand 2, single buffered']
    #allocation3 [shape = 's32[1]{0}', space=sflag, size = 0x4, scoped, tag = 'scoped memory for run_model.1']
    #allocation4 [shape = 's32[1]{0}', space=sflag, size = 0x4, scoped, tag = 'scoped memory for run_model.1']
    #allocation5 [shape = 'u8[65536]{0}', space=vmem, size = 0x10000, scoped, tag = 'input window, operand 4, single buffered']
    #allocation6 [shape = 's32[1]{0}', space=sflag, size = 0x4, scoped, tag = 'scoped memory for run_model.1']
    #allocation7 [shape = 'u8[1024]{0}', space=vmem, size = 0x400, scoped, tag = 'output window, operand 0, single buffered']
    %11 = vsyncpa [#allocation3], 0
    %12 = vsyncpa [#allocation6], 0
    %13 = vsyncpa [#allocation4], 0
    // Predicated region
    $region2: #{run_model.1} parent=1 // pred_check
      _
    $region3: #{run_model.1} parent=1 // pred_check_branch
      %15 = sbr.rel (0) target = $region5
    $region4: #{run_model.1} parent=1 // pred_region
      _
    $region5: #{run_model.1} parent=1 // pred_fallthru
      _
    // Predicated region
    $region6: #{run_model.1} parent=1 // pred_check
      _
    $region7: #{run_model.1} parent=1 // pred_check_branch
      %17 = sbr.rel (0) target = $region9
    $region8: #{run_model.1} parent=1 // pred_region
      _
    $region9: #{run_model.1} parent=1 // pred_fallthru
      _
    // Predicated region
    $region10: #{run_model.1} parent=1 // pred_check
      _
    $region11: #{run_model.1} parent=1 // pred_check_branch
      %19 = sbr.rel (0) target = $region13
    $region12: #{run_model.1} parent=1 // pred_region
      %s21 = ssub.s32 6144, 6144
      %22 = vsyncadd [#allocation3], %s21
      %s23 = sshll.u32 [#allocation2], 4
      %s24 = int_to_ptr.vmem [resolvable:$true] %s23
      %29 = dma.hbm_to_vmem [thread:$0]  %s2, 6144, %s24, [#allocation3], 64, 64, 4
    $region13: #{run_model.1} parent=1 // pred_fallthru
      _
    // Predicated region
    $region14: #{run_model.1} parent=1 // pred_check
      _
    $region15: #{run_model.1} parent=1 // pred_check_branch
      %31 = sbr.rel (0) target = $region17
    $region16: #{run_model.1} parent=1 // pred_region
      _
    $region17: #{run_model.1} parent=1 // pred_fallthru
      _
    // Predicated region
    $region18: #{run_model.1} parent=1 // pred_check
      _
    $region19: #{run_model.1} parent=1 // pred_check_branch
      %33 = sbr.rel (0) target = $region21
    $region20: #{run_model.1} parent=1 // pred_region
      %s35 = ssub.s32 2048, 2048
      %36 = vsyncadd [#allocation6], %s35
      %s37 = sshll.u32 [#allocation5], 4
      %s38 = int_to_ptr.vmem [resolvable:$true] %s37
      %43 = dma.hbm_to_vmem [thread:$0]  %s4, 2048, %s38, [#allocation6], 128, 128, 8
    $region21: #{run_model.1} parent=1 // pred_fallthru
      _
    // Predicated region
    $region22: #{run_model.1} parent=1 // pred_check
      _
    $region23: #{run_model.1} parent=1 // pred_check_branch
      %45 = sbr.rel (0) target = $region25
    $region24: #{run_model.1} parent=1 // pred_region
      _
    $region25: #{run_model.1} parent=1 // pred_fallthru
      _
    // Predicated region
    $region26: #{run_model.1} parent=1 // pred_check
      _
    $region27: #{run_model.1} parent=1 // pred_check_branch
      %47 = sbr.rel (0) target = $region29
    $region28: #{run_model.1} parent=1 // pred_region
      %48 = dma.done [#allocation3], 6144
    $region29: #{run_model.1} parent=1 // pred_fallthru
      _
    // Predicated region
    $region30: #{run_model.1} parent=1 // pred_check
      _
    $region31: #{run_model.1} parent=1 // pred_check_branch
      %50 = sbr.rel (0) target = $region33
    $region32: #{run_model.1} parent=1 // pred_region
      %51 = dma.done [#allocation6], 2048
    $region33: #{run_model.1} parent=1 // pred_fallthru
      _
    %v53 = vld [vmem:[%s1] sm:$0xf]
    %v54 = vld [vmem:[%s1 + $0x4] sm:$0xf]
    %v55 = vld [vmem:[%s1 + $0x8] sm:$0xf]
    %v56 = vld [vmem:[%s1 + $0xc] sm:$0xf]
    %v57 = vld [vmem:[%s1 + $0x10] sm:$0xf]
    %v58 = vld [vmem:[%s1 + $0x14] sm:$0xf]
    %v59 = vld [vmem:[%s1 + $0x18] sm:$0xf]
    %v60 = vld [vmem:[%s1 + $0x1c] sm:$0xf]
    %v61 = vld [vmem:[%s1 + $0x20] sm:$0xf]
    %v62 = vld [vmem:[%s1 + $0x24] sm:$0xf]
    %v63 = vld [vmem:[%s1 + $0x28] sm:$0xf]
    %v64 = vld [vmem:[%s1 + $0x2c] sm:$0xf]
    %v65 = vld [vmem:[%s1 + $0x30] sm:$0xf]
    %v66 = vld [vmem:[%s1 + $0x34] sm:$0xf]
    %v67 = vld [vmem:[%s1 + $0x38] sm:$0xf]
    %v68 = vld [vmem:[%s1 + $0x3c] sm:$0xf]
    %v69 = vld [vmem:[#allocation2] sm:$0xf]
    %v70 = vld [vmem:[#allocation2 + $0x4] sm:$0xf]
    %v71 = vld [vmem:[#allocation2 + $0x8] sm:$0xf]
    %v72 = vld [vmem:[#allocation2 + $0xc] sm:$0xf]
    %v73 = vld [vmem:[#allocation2 + $0x10] sm:$0xf]
    %v74 = vld [vmem:[#allocation2 + $0x14] sm:$0xf]
    %v75 = vld [vmem:[#allocation2 + $0x18] sm:$0xf]
    %v76 = vld [vmem:[#allocation2 + $0x1c] sm:$0xf]
    %v77 = vld [vmem:[#allocation2 + $0x20] sm:$0xf]
    %v78 = vld [vmem:[#allocation2 + $0x24] sm:$0xf]
    %v79 = vld [vmem:[#allocation2 + $0x28] sm:$0xf]
    %v80 = vld [vmem:[#allocation2 + $0x2c] sm:$0xf]
    %v81 = vld [vmem:[#allocation2 + $0x30] sm:$0xf]
    %v82 = vld [vmem:[#allocation2 + $0x34] sm:$0xf]
    %v83 = vld [vmem:[#allocation2 + $0x38] sm:$0xf]
    %v84 = vld [vmem:[#allocation2 + $0x3c] sm:$0xf]
    %v85 = vld [vmem:[#allocation2 + $0x40] sm:$0xf]
    %v86 = vld [vmem:[#allocation2 + $0x44] sm:$0xf]
    %v87 = vld [vmem:[#allocation2 + $0x48] sm:$0xf]
    %v88 = vld [vmem:[#allocation2 + $0x4c] sm:$0xf]
    %v89 = vld [vmem:[#allocation2 + $0x50] sm:$0xf]
    %v90 = vld [vmem:[#allocation2 + $0x54] sm:$0xf]
    %v91 = vld [vmem:[#allocation2 + $0x58] sm:$0xf]
    %v92 = vld [vmem:[#allocation2 + $0x5c] sm:$0xf]
    %v93 = vld [vmem:[#allocation2 + $0x60] sm:$0xf]
    %v94 = vld [vmem:[#allocation2 + $0x64] sm:$0xf]
    %v95 = vld [vmem:[#allocation2 + $0x68] sm:$0xf]
    %v96 = vld [vmem:[#allocation2 + $0x6c] sm:$0xf]
    %v97 = vld [vmem:[#allocation2 + $0x70] sm:$0xf]
    %v98 = vld [vmem:[#allocation2 + $0x74] sm:$0xf]
    %v99 = vld [vmem:[#allocation2 + $0x78] sm:$0xf]
    %v100 = vld [vmem:[#allocation2 + $0x7c] sm:$0xf]
    %s101 = scalar_lea.vmem [#allocation2], 128
    %v102 = vld [vmem:[%s101] sm:$0xf]
    %v103 = vld [vmem:[%s101 + $0x4] sm:$0xf]
    %v104 = vld [vmem:[%s101 + $0x8] sm:$0xf]
    %v105 = vld [vmem:[%s101 + $0xc] sm:$0xf]
    %v106 = vld [vmem:[%s101 + $0x10] sm:$0xf]
    %v107 = vld [vmem:[%s101 + $0x14] sm:$0xf]
    %v108 = vld [vmem:[%s101 + $0x18] sm:$0xf]
    %v109 = vld [vmem:[%s101 + $0x1c] sm:$0xf]
    %v110 = vld [vmem:[%s101 + $0x20] sm:$0xf]
    %v111 = vld [vmem:[%s101 + $0x24] sm:$0xf]
    %v112 = vld [vmem:[%s101 + $0x28] sm:$0xf]
    %v113 = vld [vmem:[%s101 + $0x2c] sm:$0xf]
    %v114 = vld [vmem:[%s101 + $0x30] sm:$0xf]
    %v115 = vld [vmem:[%s101 + $0x34] sm:$0xf]
    %v116 = vld [vmem:[%s101 + $0x38] sm:$0xf]
    %v117 = vld [vmem:[%s101 + $0x3c] sm:$0xf]
    %v118 = vld [vmem:[%s101 + $0x40] sm:$0xf]
    %v119 = vld [vmem:[%s101 + $0x44] sm:$0xf]
    %v120 = vld [vmem:[%s101 + $0x48] sm:$0xf]
    %v121 = vld [vmem:[%s101 + $0x4c] sm:$0xf]
    %v122 = vld [vmem:[%s101 + $0x50] sm:$0xf]
    %v123 = vld [vmem:[%s101 + $0x54] sm:$0xf]
    %v124 = vld [vmem:[%s101 + $0x58] sm:$0xf]
    %v125 = vld [vmem:[%s101 + $0x5c] sm:$0xf]
    %v126 = vld [vmem:[%s101 + $0x60] sm:$0xf]
    %v127 = vld [vmem:[%s101 + $0x64] sm:$0xf]
    %v128 = vld [vmem:[%s101 + $0x68] sm:$0xf]
    %v129 = vld [vmem:[%s101 + $0x6c] sm:$0xf]
    %v130 = vld [vmem:[%s101 + $0x70] sm:$0xf]
    %v131 = vld [vmem:[%s101 + $0x74] sm:$0xf]
    %v132 = vld [vmem:[%s101 + $0x78] sm:$0xf]
    %v133 = vld [vmem:[%s101 + $0x7c] sm:$0xf]
    %s134 = scalar_lea.vmem [#allocation2], 256
    %v135 = vld [vmem:[%s134] sm:$0xf]
    %v136 = vld [vmem:[%s134 + $0x4] sm:$0xf]
    %v137 = vld [vmem:[%s134 + $0x8] sm:$0xf]
    %v138 = vld [vmem:[%s134 + $0xc] sm:$0xf]
    %v139 = vld [vmem:[%s134 + $0x10] sm:$0xf]
    %v140 = vld [vmem:[%s134 + $0x14] sm:$0xf]
    %v141 = vld [vmem:[%s134 + $0x18] sm:$0xf]
    %v142 = vld [vmem:[%s134 + $0x1c] sm:$0xf]
    %v143 = vld [vmem:[%s134 + $0x20] sm:$0xf]
    %v144 = vld [vmem:[%s134 + $0x24] sm:$0xf]
    %v145 = vld [vmem:[%s134 + $0x28] sm:$0xf]
    %v146 = vld [vmem:[%s134 + $0x2c] sm:$0xf]
    %v147 = vld [vmem:[%s134 + $0x30] sm:$0xf]
    %v148 = vld [vmem:[%s134 + $0x34] sm:$0xf]
    %v149 = vld [vmem:[%s134 + $0x38] sm:$0xf]
    %v150 = vld [vmem:[%s134 + $0x3c] sm:$0xf]
    %v151 = vld [vmem:[%s134 + $0x40] sm:$0xf]
    %v152 = vld [vmem:[%s134 + $0x44] sm:$0xf]
    %v153 = vld [vmem:[%s134 + $0x48] sm:$0xf]
    %v154 = vld [vmem:[%s134 + $0x4c] sm:$0xf]
    %v155 = vld [vmem:[%s134 + $0x50] sm:$0xf]
    %v156 = vld [vmem:[%s134 + $0x54] sm:$0xf]
    %v157 = vld [vmem:[%s134 + $0x58] sm:$0xf]
    %v158 = vld [vmem:[%s134 + $0x5c] sm:$0xf]
    %v159 = vld [vmem:[%s134 + $0x60] sm:$0xf]
    %v160 = vld [vmem:[%s134 + $0x64] sm:$0xf]
    %v161 = vld [vmem:[%s134 + $0x68] sm:$0xf]
    %v162 = vld [vmem:[%s134 + $0x6c] sm:$0xf]
    %v163 = vld [vmem:[%s134 + $0x70] sm:$0xf]
    %v164 = vld [vmem:[%s134 + $0x74] sm:$0xf]
    %v165 = vld [vmem:[%s134 + $0x78] sm:$0xf]
    %v166 = vld [vmem:[%s134 + $0x7c] sm:$0xf]
    %v167 = vld [vmem:[%s3] sm:$0x1]
    %s168 = scalar_lea.vmem %s3, 1
    %v169 = vld [vmem:[%s168] sm:$0x1]
    %s170 = scalar_lea.vmem %s3, 2
    %v171 = vld [vmem:[%s170] sm:$0x1]
    %v172 = vld [vmem:[%s0] sm:$0x3]
    %v189 = vunpack.c.l.b16 %v53
    %v190 = vunpack.c.l.b16 %v54
    %v191 = vunpack.c.l.b16 %v55
    %v192 = vunpack.c.l.b16 %v56
    %v193 = vunpack.c.l.b16 %v57
    %v194 = vunpack.c.l.b16 %v58
    %v195 = vunpack.c.l.b16 %v59
    %v196 = vunpack.c.l.b16 %v60
    %v197 = vunpack.c.l.b16 %v61
    %v198 = vunpack.c.l.b16 %v62
    %v199 = vunpack.c.l.b16 %v63
    %v200 = vunpack.c.l.b16 %v64
    %v201 = vunpack.c.l.b16 %v65
    %v202 = vunpack.c.l.b16 %v66
    %v203 = vunpack.c.l.b16 %v67
    %v204 = vunpack.c.l.b16 %v68
    %v205 = vpack.c.b16 %v190, %v189
    %v206 = vpack.c.b16 %v192, %v191
    %v207 = vpack.c.b16 %v194, %v193
    %v208 = vpack.c.b16 %v196, %v195
    %v209 = vpack.c.b16 %v198, %v197
    %v210 = vpack.c.b16 %v200, %v199
    %v211 = vpack.c.b16 %v202, %v201
    %v212 = vpack.c.b16 %v204, %v203
    %221 = vmatprep.subr.bf16.mxu0 0
    %222 = vmatpush1.bf16.msra.mxu0 %v212
    %223 = vmatprep.subr.bf16.mxu0 0
    %224 = vmatpush1.bf16.msra.mxu0 %v211
    %225 = vmatprep.subr.bf16.mxu0 0
    %226 = vmatpush1.bf16.msra.mxu0 %v210
    %227 = vmatprep.subr.bf16.mxu0 0
    %228 = vmatpush1.bf16.msra.mxu0 %v209
    %229 = vmatprep.subr.bf16.mxu0 0
    %230 = vmatpush1.bf16.msra.mxu0 %v208
    %231 = vmatprep.subr.bf16.mxu0 0
    %232 = vmatpush1.bf16.msra.mxu0 %v207
    %233 = vmatprep.subr.bf16.mxu0 0
    %234 = vmatpush1.bf16.msra.mxu0 %v206
    %235 = vmatprep.subr.bf16.mxu0 0
    %236 = vmatpush1.bf16.msra.mxu0 %v205
    %237 = vmatprep.subr.bf16.mxu0 0
    %238 = vmatpush2.bf16.msra.mxu0 0
    %239 = vmatprep.subr.bf16.mxu0 0
    %240 = vmatpush2.bf16.msra.mxu0 0
    %241 = vmatprep.subr.bf16.mxu0 0
    %242 = vmatpush2.bf16.msra.mxu0 0
    %243 = vmatprep.subr.bf16.mxu0 0
    %244 = vmatpush2.bf16.msra.mxu0 0
    %245 = vmatprep.subr.bf16.mxu0 0
    %246 = vmatpush2.bf16.msra.mxu0 0
    %247 = vmatprep.subr.bf16.mxu0 0
    %248 = vmatpush2.bf16.msra.mxu0 0
    %249 = vmatprep.subr.bf16.mxu0 0
    %250 = vmatpush2.bf16.msra.mxu0 0
    %251 = vmatprep.subr.bf16.mxu0 0
    %252 = vmatpush2.bf16.msra.mxu0 0
    %253 = vmatprep.mubr.bf16.mxu0 0
    %254 = vmatmul.mubr.bf16.gmra.mxu0 0
    %v255 = vpop.f32.mrf.mxu0
    %v256 = vadd.f32 0.0, %v255
    %v257 = vpop.f32.mrf.mxu0
    %v258 = vpop.f32.mrf.mxu0
    %v259 = vpop.f32.mrf.mxu0
    %260 = vdwg.mxu0
    %v261 = vadd.f32 %v172, %v256
    %v262 = vmax.f32 %v261, 0.0
    %s263 = scalar_lea.vmem %s0, 2
    %v264 = vld [vmem:[%s263] sm:$0x3]
    %v265 = vpack.c.bf16 %v262, %v262
    %266 = vmatprep.subr.bf16.mxu0 0
    %267 = vmatpush1.bf16.msra.mxu0 %v212
    %268 = vmatprep.subr.bf16.mxu0 0
    %269 = vmatpush1.bf16.msra.mxu0 %v211
    %270 = vmatprep.subr.bf16.mxu0 0
    %271 = vmatpush1.bf16.msra.mxu0 %v210
    %272 = vmatprep.subr.bf16.mxu0 0
    %273 = vmatpush1.bf16.msra.mxu0 %v209
    %274 = vmatprep.subr.bf16.mxu0 0
    %275 = vmatpush1.bf16.msra.mxu0 %v208
    %276 = vmatprep.subr.bf16.mxu0 0
    %277 = vmatpush1.bf16.msra.mxu0 %v207
    %278 = vmatprep.subr.bf16.mxu0 0
    %279 = vmatpush1.bf16.msra.mxu0 %v206
    %280 = vmatprep.subr.bf16.mxu0 0
    %281 = vmatpush1.bf16.msra.mxu0 %v205
    %282 = vmatprep.subr.bf16.mxu0 0
    %283 = vmatpush2.bf16.msra.mxu0 0
    %284 = vmatprep.subr.bf16.mxu0 0
    %285 = vmatpush2.bf16.msra.mxu0 0
    %286 = vmatprep.subr.bf16.mxu0 0
    %287 = vmatpush2.bf16.msra.mxu0 0
    %288 = vmatprep.subr.bf16.mxu0 0
    %289 = vmatpush2.bf16.msra.mxu0 0
    %290 = vmatprep.subr.bf16.mxu0 0
    %291 = vmatpush2.bf16.msra.mxu0 0
    %292 = vmatprep.subr.bf16.mxu0 0
    %293 = vmatpush2.bf16.msra.mxu0 0
    %294 = vmatprep.subr.bf16.mxu0 0
    %295 = vmatpush2.bf16.msra.mxu0 0
    %296 = vmatprep.subr.bf16.mxu0 0
    %297 = vmatpush2.bf16.msra.mxu0 0
    %298 = vmatprep.mubr.bf16.mxu0 0
    %299 = vmatmul.mubr.bf16.gmra.mxu0 %v265
    %v300 = vpop.f32.mrf.mxu0
    %v301 = vadd.f32 0.0, %v300
    %v302 = vpop.f32.mrf.mxu0
    %v303 = vpop.f32.mrf.mxu0
    %v304 = vpop.f32.mrf.mxu0
    %305 = vdwg.mxu0
    %v306 = vadd.f32 %v264, %v301
    %v307 = vmax.f32 %v306, 0.0
    %v308 = vpack.c.bf16 0.0, 0.0
    %v341 = vunpack.c.l.b16 %v69
    %v342 = vunpack.c.l.b16 %v70
    %v343 = vunpack.c.l.b16 %v71
    %v344 = vunpack.c.l.b16 %v72
    %v345 = vunpack.c.l.b16 %v73
    %v346 = vunpack.c.l.b16 %v74
    %v347 = vunpack.c.l.b16 %v75
    %v348 = vunpack.c.l.b16 %v76
    %v349 = vunpack.c.l.b16 %v77
    %v350 = vunpack.c.l.b16 %v78
    %v351 = vunpack.c.l.b16 %v79
    %v352 = vunpack.c.l.b16 %v80
    %v353 = vunpack.c.l.b16 %v81
    %v354 = vunpack.c.l.b16 %v82
    %v355 = vunpack.c.l.b16 %v83
    %v356 = vunpack.c.l.b16 %v84
    %v357 = vunpack.c.l.b16 %v85
    %v358 = vunpack.c.l.b16 %v86
    %v359 = vunpack.c.l.b16 %v87
    %v360 = vunpack.c.l.b16 %v88
    %v361 = vunpack.c.l.b16 %v89
    %v362 = vunpack.c.l.b16 %v90
    %v363 = vunpack.c.l.b16 %v91
    %v364 = vunpack.c.l.b16 %v92
    %v365 = vunpack.c.l.b16 %v93
    %v366 = vunpack.c.l.b16 %v94
    %v367 = vunpack.c.l.b16 %v95
    %v368 = vunpack.c.l.b16 %v96
    %v369 = vunpack.c.l.b16 %v97
    %v370 = vunpack.c.l.b16 %v98
    %v371 = vunpack.c.l.b16 %v99
    %v372 = vunpack.c.l.b16 %v100
    %v373 = vpack.c.b16 %v342, %v341
    %v374 = vpack.c.b16 %v344, %v343
    %v375 = vpack.c.b16 %v346, %v345
    %v376 = vpack.c.b16 %v348, %v347
    %v377 = vpack.c.b16 %v350, %v349
    %v378 = vpack.c.b16 %v352, %v351
    %v379 = vpack.c.b16 %v354, %v353
    %v380 = vpack.c.b16 %v356, %v355
    %v381 = vpack.c.b16 %v358, %v357
    %v382 = vpack.c.b16 %v360, %v359
    %v383 = vpack.c.b16 %v362, %v361
    %v384 = vpack.c.b16 %v364, %v363
    %v385 = vpack.c.b16 %v366, %v365
    %v386 = vpack.c.b16 %v368, %v367
    %v387 = vpack.c.b16 %v370, %v369
    %v388 = vpack.c.b16 %v372, %v371
    %405 = vmatprep.subr.bf16.mxu0 0
    %406 = vmatpush1.bf16.msra.mxu0 %v380
    %407 = vmatprep.subr.bf16.mxu0 0
    %408 = vmatpush1.bf16.msra.mxu0 %v379
    %409 = vmatprep.subr.bf16.mxu0 0
    %410 = vmatpush1.bf16.msra.mxu0 %v378
    %411 = vmatprep.subr.bf16.mxu0 0
    %412 = vmatpush1.bf16.msra.mxu0 %v377
    %413 = vmatprep.subr.bf16.mxu0 0
    %414 = vmatpush1.bf16.msra.mxu0 %v376
    %415 = vmatprep.subr.bf16.mxu0 0
    %416 = vmatpush1.bf16.msra.mxu0 %v375
    %417 = vmatprep.subr.bf16.mxu0 0
    %418 = vmatpush1.bf16.msra.mxu0 %v374
    %419 = vmatprep.subr.bf16.mxu0 0
    %420 = vmatpush1.bf16.msra.mxu0 %v373
    %421 = vmatprep.subr.bf16.mxu0 0
    %422 = vmatpush2.bf16.msra.mxu0 %v388
    %423 = vmatprep.subr.bf16.mxu0 0
    %424 = vmatpush2.bf16.msra.mxu0 %v387
    %425 = vmatprep.subr.bf16.mxu0 0
    %426 = vmatpush2.bf16.msra.mxu0 %v386
    %427 = vmatprep.subr.bf16.mxu0 0
    %428 = vmatpush2.bf16.msra.mxu0 %v385
    %429 = vmatprep.subr.bf16.mxu0 0
    %430 = vmatpush2.bf16.msra.mxu0 %v384
    %431 = vmatprep.subr.bf16.mxu0 0
    %432 = vmatpush2.bf16.msra.mxu0 %v383
    %433 = vmatprep.subr.bf16.mxu0 0
    %434 = vmatpush2.bf16.msra.mxu0 %v382
    %435 = vmatprep.subr.bf16.mxu0 0
    %436 = vmatpush2.bf16.msra.mxu0 %v381
    %437 = vmatprep.mubr.bf16.mxu0 %v308
    %438 = vmatmul.mubr.bf16.gmra.mxu0 %v265
    %v439 = vpop.f32.mrf.mxu0
    %v440 = vadd.f32 0.0, %v439
    %v441 = vpop.f32.mrf.mxu0
    %v442 = vpop.f32.mrf.mxu0
    %v443 = vpop.f32.mrf.mxu0
    %444 = vdwg.mxu0
    %v446 = vlaneseq
    %v447 = vshrl.u32 %v446, 7
    %v448 = vsub.s32 0, %v447
    %v449 = vrot.slane %v167, %v448
    %v451 = vadd.f32 %v449, %v440
    %v452 = vmax.f32 %v451, 0.0
    %s453 = scalar_lea.vmem %s0, 4
    %v454 = vld [vmem:[%s453] sm:$0x3]
    %v455 = vpack.c.bf16 %v307, %v307
    %456 = vmatprep.subr.bf16.mxu0 0
    %457 = vmatpush1.bf16.msra.mxu0 %v212
    %458 = vmatprep.subr.bf16.mxu0 0
    %459 = vmatpush1.bf16.msra.mxu0 %v211
    %460 = vmatprep.subr.bf16.mxu0 0
    %461 = vmatpush1.bf16.msra.mxu0 %v210
    %462 = vmatprep.subr.bf16.mxu0 0
    %463 = vmatpush1.bf16.msra.mxu0 %v209
    %464 = vmatprep.subr.bf16.mxu0 0
    %465 = vmatpush1.bf16.msra.mxu0 %v208
    %466 = vmatprep.subr.bf16.mxu0 0
    %467 = vmatpush1.bf16.msra.mxu0 %v207
    %468 = vmatprep.subr.bf16.mxu0 0
    %469 = vmatpush1.bf16.msra.mxu0 %v206
    %470 = vmatprep.subr.bf16.mxu0 0
    %471 = vmatpush1.bf16.msra.mxu0 %v205
    %472 = vmatprep.subr.bf16.mxu0 0
    %473 = vmatpush2.bf16.msra.mxu0 0
    %474 = vmatprep.subr.bf16.mxu0 0
    %475 = vmatpush2.bf16.msra.mxu0 0
    %476 = vmatprep.subr.bf16.mxu0 0
    %477 = vmatpush2.bf16.msra.mxu0 0
    %478 = vmatprep.subr.bf16.mxu0 0
    %479 = vmatpush2.bf16.msra.mxu0 0
    %480 = vmatprep.subr.bf16.mxu0 0
    %481 = vmatpush2.bf16.msra.mxu0 0
    %482 = vmatprep.subr.bf16.mxu0 0
    %483 = vmatpush2.bf16.msra.mxu0 0
    %484 = vmatprep.subr.bf16.mxu0 0
    %485 = vmatpush2.bf16.msra.mxu0 0
    %486 = vmatprep.subr.bf16.mxu0 0
    %487 = vmatpush2.bf16.msra.mxu0 0
    %488 = vmatprep.mubr.bf16.mxu0 0
    %489 = vmatmul.mubr.bf16.gmra.mxu0 %v455
    %v490 = vpop.f32.mrf.mxu0
    %v491 = vadd.f32 0.0, %v490
    %v492 = vpop.f32.mrf.mxu0
    %v493 = vpop.f32.mrf.mxu0
    %v494 = vpop.f32.mrf.mxu0
    %495 = vdwg.mxu0
    %v496 = vadd.f32 %v454, %v491
    %v497 = vmax.f32 %v496, 0.0
    %v498 = vpack.c.bf16 %v452, %v452
    %499 = vmatprep.subr.bf16.mxu0 0
    %500 = vmatpush1.bf16.msra.mxu0 %v380
    %501 = vmatprep.subr.bf16.mxu0 0
    %502 = vmatpush1.bf16.msra.mxu0 %v379
    %503 = vmatprep.subr.bf16.mxu0 0
    %504 = vmatpush1.bf16.msra.mxu0 %v378
    %505 = vmatprep.subr.bf16.mxu0 0
    %506 = vmatpush1.bf16.msra.mxu0 %v377
    %507 = vmatprep.subr.bf16.mxu0 0
    %508 = vmatpush1.bf16.msra.mxu0 %v376
    %509 = vmatprep.subr.bf16.mxu0 0
    %510 = vmatpush1.bf16.msra.mxu0 %v375
    %511 = vmatprep.subr.bf16.mxu0 0
    %512 = vmatpush1.bf16.msra.mxu0 %v374
    %513 = vmatprep.subr.bf16.mxu0 0
    %514 = vmatpush1.bf16.msra.mxu0 %v373
    %515 = vmatprep.subr.bf16.mxu0 0
    %516 = vmatpush2.bf16.msra.mxu0 %v388
    %517 = vmatprep.subr.bf16.mxu0 0
    %518 = vmatpush2.bf16.msra.mxu0 %v387
    %519 = vmatprep.subr.bf16.mxu0 0
    %520 = vmatpush2.bf16.msra.mxu0 %v386
    %521 = vmatprep.subr.bf16.mxu0 0
    %522 = vmatpush2.bf16.msra.mxu0 %v385
    %523 = vmatprep.subr.bf16.mxu0 0
    %524 = vmatpush2.bf16.msra.mxu0 %v384
    %525 = vmatprep.subr.bf16.mxu0 0
    %526 = vmatpush2.bf16.msra.mxu0 %v383
    %527 = vmatprep.subr.bf16.mxu0 0
    %528 = vmatpush2.bf16.msra.mxu0 %v382
    %529 = vmatprep.subr.bf16.mxu0 0
    %530 = vmatpush2.bf16.msra.mxu0 %v381
    %531 = vmatprep.mubr.bf16.mxu0 %v498
    %532 = vmatmul.mubr.bf16.gmra.mxu0 %v455
    %v533 = vpop.f32.mrf.mxu0
    %v534 = vadd.f32 0.0, %v533
    %v535 = vpop.f32.mrf.mxu0
    %v536 = vpop.f32.mrf.mxu0
    %v537 = vpop.f32.mrf.mxu0
    %538 = vdwg.mxu0
    %v539 = vadd.f32 %v449, %v534
    %v540 = vmax.f32 %v539, 0.0
    %v573 = vunpack.c.l.b16 %v102
    %v574 = vunpack.c.l.b16 %v103
    %v575 = vunpack.c.l.b16 %v104
    %v576 = vunpack.c.l.b16 %v105
    %v577 = vunpack.c.l.b16 %v106
    %v578 = vunpack.c.l.b16 %v107
    %v579 = vunpack.c.l.b16 %v108
    %v580 = vunpack.c.l.b16 %v109
    %v581 = vunpack.c.l.b16 %v110
    %v582 = vunpack.c.l.b16 %v111
    %v583 = vunpack.c.l.b16 %v112
    %v584 = vunpack.c.l.b16 %v113
    %v585 = vunpack.c.l.b16 %v114
    %v586 = vunpack.c.l.b16 %v115
    %v587 = vunpack.c.l.b16 %v116
    %v588 = vunpack.c.l.b16 %v117
    %v589 = vunpack.c.l.b16 %v118
    %v590 = vunpack.c.l.b16 %v119
    %v591 = vunpack.c.l.b16 %v120
    %v592 = vunpack.c.l.b16 %v121
    %v593 = vunpack.c.l.b16 %v122
    %v594 = vunpack.c.l.b16 %v123
    %v595 = vunpack.c.l.b16 %v124
    %v596 = vunpack.c.l.b16 %v125
    %v597 = vunpack.c.l.b16 %v126
    %v598 = vunpack.c.l.b16 %v127
    %v599 = vunpack.c.l.b16 %v128
    %v600 = vunpack.c.l.b16 %v129
    %v601 = vunpack.c.l.b16 %v130
    %v602 = vunpack.c.l.b16 %v131
    %v603 = vunpack.c.l.b16 %v132
    %v604 = vunpack.c.l.b16 %v133
    %v605 = vpack.c.b16 %v574, %v573
    %v606 = vpack.c.b16 %v576, %v575
    %v607 = vpack.c.b16 %v578, %v577
    %v608 = vpack.c.b16 %v580, %v579
    %v609 = vpack.c.b16 %v582, %v581
    %v610 = vpack.c.b16 %v584, %v583
    %v611 = vpack.c.b16 %v586, %v585
    %v612 = vpack.c.b16 %v588, %v587
    %v613 = vpack.c.b16 %v590, %v589
    %v614 = vpack.c.b16 %v592, %v591
    %v615 = vpack.c.b16 %v594, %v593
    %v616 = vpack.c.b16 %v596, %v595
    %v617 = vpack.c.b16 %v598, %v597
    %v618 = vpack.c.b16 %v600, %v599
    %v619 = vpack.c.b16 %v602, %v601
    %v620 = vpack.c.b16 %v604, %v603
    %637 = vmatprep.subr.bf16.mxu0 0
    %638 = vmatpush1.bf16.msra.mxu0 %v612
    %639 = vmatprep.subr.bf16.mxu0 0
    %640 = vmatpush1.bf16.msra.mxu0 %v611
    %641 = vmatprep.subr.bf16.mxu0 0
    %642 = vmatpush1.bf16.msra.mxu0 %v610
    %643 = vmatprep.subr.bf16.mxu0 0
    %644 = vmatpush1.bf16.msra.mxu0 %v609
    %645 = vmatprep.subr.bf16.mxu0 0
    %646 = vmatpush1.bf16.msra.mxu0 %v608
    %647 = vmatprep.subr.bf16.mxu0 0
    %648 = vmatpush1.bf16.msra.mxu0 %v607
    %649 = vmatprep.subr.bf16.mxu0 0
    %650 = vmatpush1.bf16.msra.mxu0 %v606
    %651 = vmatprep.subr.bf16.mxu0 0
    %652 = vmatpush1.bf16.msra.mxu0 %v605
    %653 = vmatprep.subr.bf16.mxu0 0
    %654 = vmatpush2.bf16.msra.mxu0 %v620
    %655 = vmatprep.subr.bf16.mxu0 0
    %656 = vmatpush2.bf16.msra.mxu0 %v619
    %657 = vmatprep.subr.bf16.mxu0 0
    %658 = vmatpush2.bf16.msra.mxu0 %v618
    %659 = vmatprep.subr.bf16.mxu0 0
    %660 = vmatpush2.bf16.msra.mxu0 %v617
    %661 = vmatprep.subr.bf16.mxu0 0
    %662 = vmatpush2.bf16.msra.mxu0 %v616
    %663 = vmatprep.subr.bf16.mxu0 0
    %664 = vmatpush2.bf16.msra.mxu0 %v615
    %665 = vmatprep.subr.bf16.mxu0 0
    %666 = vmatpush2.bf16.msra.mxu0 %v614
    %667 = vmatprep.subr.bf16.mxu0 0
    %668 = vmatpush2.bf16.msra.mxu0 %v613
    %669 = vmatprep.mubr.bf16.mxu0 %v308
    %670 = vmatmul.mubr.bf16.gmra.mxu0 %v498
    %v671 = vpop.f32.mrf.mxu0
    %v672 = vadd.f32 0.0, %v671
    %v673 = vpop.f32.mrf.mxu0
    %v674 = vpop.f32.mrf.mxu0
    %v675 = vpop.f32.mrf.mxu0
    %676 = vdwg.mxu0
    %v678 = vlaneseq
    %v679 = vshrl.u32 %v678, 7
    %v680 = vsub.s32 0, %v679
    %v681 = vrot.slane %v169, %v680
    %v683 = vadd.f32 %v681, %v672
    %v684 = vmax.f32 %v683, 0.0
    %s685 = scalar_lea.vmem %s0, 6
    %v686 = vld [vmem:[%s685] sm:$0x3]
    %v687 = vpack.c.bf16 %v497, %v497
    %688 = vmatprep.subr.bf16.mxu0 0
    %689 = vmatpush1.bf16.msra.mxu0 %v212
    %690 = vmatprep.subr.bf16.mxu0 0
    %691 = vmatpush1.bf16.msra.mxu0 %v211
    %692 = vmatprep.subr.bf16.mxu0 0
    %693 = vmatpush1.bf16.msra.mxu0 %v210
    %694 = vmatprep.subr.bf16.mxu0 0
    %695 = vmatpush1.bf16.msra.mxu0 %v209
    %696 = vmatprep.subr.bf16.mxu0 0
    %697 = vmatpush1.bf16.msra.mxu0 %v208
    %698 = vmatprep.subr.bf16.mxu0 0
    %699 = vmatpush1.bf16.msra.mxu0 %v207
    %700 = vmatprep.subr.bf16.mxu0 0
    %701 = vmatpush1.bf16.msra.mxu0 %v206
    %702 = vmatprep.subr.bf16.mxu0 0
    %703 = vmatpush1.bf16.msra.mxu0 %v205
    %704 = vmatprep.subr.bf16.mxu0 0
    %705 = vmatpush2.bf16.msra.mxu0 0
    %706 = vmatprep.subr.bf16.mxu0 0
    %707 = vmatpush2.bf16.msra.mxu0 0
    %708 = vmatprep.subr.bf16.mxu0 0
    %709 = vmatpush2.bf16.msra.mxu0 0
    %710 = vmatprep.subr.bf16.mxu0 0
    %711 = vmatpush2.bf16.msra.mxu0 0
    %712 = vmatprep.subr.bf16.mxu0 0
    %713 = vmatpush2.bf16.msra.mxu0 0
    %714 = vmatprep.subr.bf16.mxu0 0
    %715 = vmatpush2.bf16.msra.mxu0 0
    %716 = vmatprep.subr.bf16.mxu0 0
    %717 = vmatpush2.bf16.msra.mxu0 0
    %718 = vmatprep.subr.bf16.mxu0 0
    %719 = vmatpush2.bf16.msra.mxu0 0
    %720 = vmatprep.mubr.bf16.mxu0 0
    %721 = vmatmul.mubr.bf16.gmra.mxu0 %v687
    %v722 = vpop.f32.mrf.mxu0
    %v723 = vadd.f32 0.0, %v722
    %v724 = vpop.f32.mrf.mxu0
    %v725 = vpop.f32.mrf.mxu0
    %v726 = vpop.f32.mrf.mxu0
    %727 = vdwg.mxu0
    %v728 = vadd.f32 %v686, %v723
    %v729 = vmax.f32 %v728, 0.0
    %v730 = vpack.c.bf16 %v540, %v540
    %731 = vmatprep.subr.bf16.mxu0 0
    %732 = vmatpush1.bf16.msra.mxu0 %v380
    %733 = vmatprep.subr.bf16.mxu0 0
    %734 = vmatpush1.bf16.msra.mxu0 %v379
    %735 = vmatprep.subr.bf16.mxu0 0
    %736 = vmatpush1.bf16.msra.mxu0 %v378
    %737 = vmatprep.subr.bf16.mxu0 0
    %738 = vmatpush1.bf16.msra.mxu0 %v377
    %739 = vmatprep.subr.bf16.mxu0 0
    %740 = vmatpush1.bf16.msra.mxu0 %v376
    %741 = vmatprep.subr.bf16.mxu0 0
    %742 = vmatpush1.bf16.msra.mxu0 %v375
    %743 = vmatprep.subr.bf16.mxu0 0
    %744 = vmatpush1.bf16.msra.mxu0 %v374
    %745 = vmatprep.subr.bf16.mxu0 0
    %746 = vmatpush1.bf16.msra.mxu0 %v373
    %747 = vmatprep.subr.bf16.mxu0 0
    %748 = vmatpush2.bf16.msra.mxu0 %v388
    %749 = vmatprep.subr.bf16.mxu0 0
    %750 = vmatpush2.bf16.msra.mxu0 %v387
    %751 = vmatprep.subr.bf16.mxu0 0
    %752 = vmatpush2.bf16.msra.mxu0 %v386
    %753 = vmatprep.subr.bf16.mxu0 0
    %754 = vmatpush2.bf16.msra.mxu0 %v385
    %755 = vmatprep.subr.bf16.mxu0 0
    %756 = vmatpush2.bf16.msra.mxu0 %v384
    %757 = vmatprep.subr.bf16.mxu0 0
    %758 = vmatpush2.bf16.msra.mxu0 %v383
    %759 = vmatprep.subr.bf16.mxu0 0
    %760 = vmatpush2.bf16.msra.mxu0 %v382
    %761 = vmatprep.subr.bf16.mxu0 0
    %762 = vmatpush2.bf16.msra.mxu0 %v381
    %763 = vmatprep.mubr.bf16.mxu0 %v730
    %764 = vmatmul.mubr.bf16.gmra.mxu0 %v687
    %v765 = vpop.f32.mrf.mxu0
    %v766 = vadd.f32 0.0, %v765
    %v767 = vpop.f32.mrf.mxu0
    %v768 = vpop.f32.mrf.mxu0
    %v769 = vpop.f32.mrf.mxu0
    %770 = vdwg.mxu0
    %v771 = vadd.f32 %v449, %v766
    %v772 = vmax.f32 %v771, 0.0
    %v773 = vpack.c.bf16 %v684, %v684
    %774 = vmatprep.subr.bf16.mxu0 0
    %775 = vmatpush1.bf16.msra.mxu0 %v612
    %776 = vmatprep.subr.bf16.mxu0 0
    %777 = vmatpush1.bf16.msra.mxu0 %v611
    %778 = vmatprep.subr.bf16.mxu0 0
    %779 = vmatpush1.bf16.msra.mxu0 %v610
    %780 = vmatprep.subr.bf16.mxu0 0
    %781 = vmatpush1.bf16.msra.mxu0 %v609
    %782 = vmatprep.subr.bf16.mxu0 0
    %783 = vmatpush1.bf16.msra.mxu0 %v608
    %784 = vmatprep.subr.bf16.mxu0 0
    %785 = vmatpush1.bf16.msra.mxu0 %v607
    %786 = vmatprep.subr.bf16.mxu0 0
    %787 = vmatpush1.bf16.msra.mxu0 %v606
    %788 = vmatprep.subr.bf16.mxu0 0
    %789 = vmatpush1.bf16.msra.mxu0 %v605
    %790 = vmatprep.subr.bf16.mxu0 0
    %791 = vmatpush2.bf16.msra.mxu0 %v620
    %792 = vmatprep.subr.bf16.mxu0 0
    %793 = vmatpush2.bf16.msra.mxu0 %v619
    %794 = vmatprep.subr.bf16.mxu0 0
    %795 = vmatpush2.bf16.msra.mxu0 %v618
    %796 = vmatprep.subr.bf16.mxu0 0
    %797 = vmatpush2.bf16.msra.mxu0 %v617
    %798 = vmatprep.subr.bf16.mxu0 0
    %799 = vmatpush2.bf16.msra.mxu0 %v616
    %800 = vmatprep.subr.bf16.mxu0 0
    %801 = vmatpush2.bf16.msra.mxu0 %v615
    %802 = vmatprep.subr.bf16.mxu0 0
    %803 = vmatpush2.bf16.msra.mxu0 %v614
    %804 = vmatprep.subr.bf16.mxu0 0
    %805 = vmatpush2.bf16.msra.mxu0 %v613
    %806 = vmatprep.mubr.bf16.mxu0 %v773
    %807 = vmatmul.mubr.bf16.gmra.mxu0 %v730
    %v808 = vpop.f32.mrf.mxu0
    %v809 = vadd.f32 0.0, %v808
    %v810 = vpop.f32.mrf.mxu0
    %v811 = vpop.f32.mrf.mxu0
    %v812 = vpop.f32.mrf.mxu0
    %813 = vdwg.mxu0
    %v814 = vadd.f32 %v681, %v809
    %v815 = vmax.f32 %v814, 0.0
    %v848 = vunpack.c.l.b16 %v135
    %v849 = vunpack.c.l.b16 %v136
    %v850 = vunpack.c.l.b16 %v137
    %v851 = vunpack.c.l.b16 %v138
    %v852 = vunpack.c.l.b16 %v139
    %v853 = vunpack.c.l.b16 %v140
    %v854 = vunpack.c.l.b16 %v141
    %v855 = vunpack.c.l.b16 %v142
    %v856 = vunpack.c.l.b16 %v143
    %v857 = vunpack.c.l.b16 %v144
    %v858 = vunpack.c.l.b16 %v145
    %v859 = vunpack.c.l.b16 %v146
    %v860 = vunpack.c.l.b16 %v147
    %v861 = vunpack.c.l.b16 %v148
    %v862 = vunpack.c.l.b16 %v149
    %v863 = vunpack.c.l.b16 %v150
    %v864 = vunpack.c.l.b16 %v151
    %v865 = vunpack.c.l.b16 %v152
    %v866 = vunpack.c.l.b16 %v153
    %v867 = vunpack.c.l.b16 %v154
    %v868 = vunpack.c.l.b16 %v155
    %v869 = vunpack.c.l.b16 %v156
    %v870 = vunpack.c.l.b16 %v157
    %v871 = vunpack.c.l.b16 %v158
    %v872 = vunpack.c.l.b16 %v159
    %v873 = vunpack.c.l.b16 %v160
    %v874 = vunpack.c.l.b16 %v161
    %v875 = vunpack.c.l.b16 %v162
    %v876 = vunpack.c.l.b16 %v163
    %v877 = vunpack.c.l.b16 %v164
    %v878 = vunpack.c.l.b16 %v165
    %v879 = vunpack.c.l.b16 %v166
    %v880 = vpack.c.b16 %v849, %v848
    %v881 = vpack.c.b16 %v851, %v850
    %v882 = vpack.c.b16 %v853, %v852
    %v883 = vpack.c.b16 %v855, %v854
    %v884 = vpack.c.b16 %v857, %v856
    %v885 = vpack.c.b16 %v859, %v858
    %v886 = vpack.c.b16 %v861, %v860
    %v887 = vpack.c.b16 %v863, %v862
    %v888 = vpack.c.b16 %v865, %v864
    %v889 = vpack.c.b16 %v867, %v866
    %v890 = vpack.c.b16 %v869, %v868
    %v891 = vpack.c.b16 %v871, %v870
    %v892 = vpack.c.b16 %v873, %v872
    %v893 = vpack.c.b16 %v875, %v874
    %v894 = vpack.c.b16 %v877, %v876
    %v895 = vpack.c.b16 %v879, %v878
    %912 = vmatprep.subr.bf16.mxu0 0
    %913 = vmatpush1.bf16.msra.mxu0 %v887
    %914 = vmatprep.subr.bf16.mxu0 0
    %915 = vmatpush1.bf16.msra.mxu0 %v886
    %916 = vmatprep.subr.bf16.mxu0 0
    %917 = vmatpush1.bf16.msra.mxu0 %v885
    %918 = vmatprep.subr.bf16.mxu0 0
    %919 = vmatpush1.bf16.msra.mxu0 %v884
    %920 = vmatprep.subr.bf16.mxu0 0
    %921 = vmatpush1.bf16.msra.mxu0 %v883
    %922 = vmatprep.subr.bf16.mxu0 0
    %923 = vmatpush1.bf16.msra.mxu0 %v882
    %924 = vmatprep.subr.bf16.mxu0 0
    %925 = vmatpush1.bf16.msra.mxu0 %v881
    %926 = vmatprep.subr.bf16.mxu0 0
    %927 = vmatpush1.bf16.msra.mxu0 %v880
    %928 = vmatprep.subr.bf16.mxu0 0
    %929 = vmatpush2.bf16.msra.mxu0 %v895
    %930 = vmatprep.subr.bf16.mxu0 0
    %931 = vmatpush2.bf16.msra.mxu0 %v894
    %932 = vmatprep.subr.bf16.mxu0 0
    %933 = vmatpush2.bf16.msra.mxu0 %v893
    %934 = vmatprep.subr.bf16.mxu0 0
    %935 = vmatpush2.bf16.msra.mxu0 %v892
    %936 = vmatprep.subr.bf16.mxu0 0
    %937 = vmatpush2.bf16.msra.mxu0 %v891
    %938 = vmatprep.subr.bf16.mxu0 0
    %939 = vmatpush2.bf16.msra.mxu0 %v890
    %940 = vmatprep.subr.bf16.mxu0 0
    %941 = vmatpush2.bf16.msra.mxu0 %v889
    %942 = vmatprep.subr.bf16.mxu0 0
    %943 = vmatpush2.bf16.msra.mxu0 %v888
    %944 = vmatprep.mubr.bf16.mxu0 %v308
    %945 = vmatmul.mubr.bf16.gmra.mxu0 %v773
    %v946 = vpop.f32.mrf.mxu0
    %v947 = vadd.f32 0.0, %v946
    %v948 = vpop.f32.mrf.mxu0
    %v949 = vpop.f32.mrf.mxu0
    %v950 = vpop.f32.mrf.mxu0
    %951 = vdwg.mxu0
    %v953 = vlaneseq
    %v954 = vshrl.u32 %v953, 7
    %v955 = vsub.s32 0, %v954
    %v956 = vrot.slane %v171, %v955
    %v958 = vadd.f32 %v956, %v947
    %v959 = vmax.f32 %v958, 0.0
    %s960 = scalar_lea.vmem %s0, 8
    %v961 = vld [vmem:[%s960] sm:$0x3]
    %v962 = vpack.c.bf16 %v729, %v729
    %963 = vmatprep.subr.bf16.mxu0 0
    %964 = vmatpush1.bf16.msra.mxu0 %v212
    %965 = vmatprep.subr.bf16.mxu0 0
    %966 = vmatpush1.bf16.msra.mxu0 %v211
    %967 = vmatprep.subr.bf16.mxu0 0
    %968 = vmatpush1.bf16.msra.mxu0 %v210
    %969 = vmatprep.subr.bf16.mxu0 0
    %970 = vmatpush1.bf16.msra.mxu0 %v209
    %971 = vmatprep.subr.bf16.mxu0 0
    %972 = vmatpush1.bf16.msra.mxu0 %v208
    %973 = vmatprep.subr.bf16.mxu0 0
    %974 = vmatpush1.bf16.msra.mxu0 %v207
    %975 = vmatprep.subr.bf16.mxu0 0
    %976 = vmatpush1.bf16.msra.mxu0 %v206
    %977 = vmatprep.subr.bf16.mxu0 0
    %978 = vmatpush1.bf16.msra.mxu0 %v205
    %979 = vmatprep.subr.bf16.mxu0 0
    %980 = vmatpush2.bf16.msra.mxu0 0
    %981 = vmatprep.subr.bf16.mxu0 0
    %982 = vmatpush2.bf16.msra.mxu0 0
    %983 = vmatprep.subr.bf16.mxu0 0
    %984 = vmatpush2.bf16.msra.mxu0 0
    %985 = vmatprep.subr.bf16.mxu0 0
    %986 = vmatpush2.bf16.msra.mxu0 0
    %987 = vmatprep.subr.bf16.mxu0 0
    %988 = vmatpush2.bf16.msra.mxu0 0
    %989 = vmatprep.subr.bf16.mxu0 0
    %990 = vmatpush2.bf16.msra.mxu0 0
    %991 = vmatprep.subr.bf16.mxu0 0
    %992 = vmatpush2.bf16.msra.mxu0 0
    %993 = vmatprep.subr.bf16.mxu0 0
    %994 = vmatpush2.bf16.msra.mxu0 0
    %995 = vmatprep.mubr.bf16.mxu0 0
    %996 = vmatmul.mubr.bf16.gmra.mxu0 %v962
    %v997 = vpop.f32.mrf.mxu0
    %v998 = vadd.f32 0.0, %v997
    %v999 = vpop.f32.mrf.mxu0
    %v1000 = vpop.f32.mrf.mxu0
    %v1001 = vpop.f32.mrf.mxu0
    %1002 = vdwg.mxu0
    %v1003 = vadd.f32 %v961, %v998
    %v1004 = vmax.f32 %v1003, 0.0
    %v1005 = vpack.c.bf16 %v772, %v772
    %1006 = vmatprep.subr.bf16.mxu0 0
    %1007 = vmatpush1.bf16.msra.mxu0 %v380
    %1008 = vmatprep.subr.bf16.mxu0 0
    %1009 = vmatpush1.bf16.msra.mxu0 %v379
    %1010 = vmatprep.subr.bf16.mxu0 0
    %1011 = vmatpush1.bf16.msra.mxu0 %v378
    %1012 = vmatprep.subr.bf16.mxu0 0
    %1013 = vmatpush1.bf16.msra.mxu0 %v377
    %1014 = vmatprep.subr.bf16.mxu0 0
    %1015 = vmatpush1.bf16.msra.mxu0 %v376
    %1016 = vmatprep.subr.bf16.mxu0 0
    %1017 = vmatpush1.bf16.msra.mxu0 %v375
    %1018 = vmatprep.subr.bf16.mxu0 0
    %1019 = vmatpush1.bf16.msra.mxu0 %v374
    %1020 = vmatprep.subr.bf16.mxu0 0
    %1021 = vmatpush1.bf16.msra.mxu0 %v373
    %1022 = vmatprep.subr.bf16.mxu0 0
    %1023 = vmatpush2.bf16.msra.mxu0 %v388
    %1024 = vmatprep.subr.bf16.mxu0 0
    %1025 = vmatpush2.bf16.msra.mxu0 %v387
    %1026 = vmatprep.subr.bf16.mxu0 0
    %1027 = vmatpush2.bf16.msra.mxu0 %v386
    %1028 = vmatprep.subr.bf16.mxu0 0
    %1029 = vmatpush2.bf16.msra.mxu0 %v385
    %1030 = vmatprep.subr.bf16.mxu0 0
    %1031 = vmatpush2.bf16.msra.mxu0 %v384
    %1032 = vmatprep.subr.bf16.mxu0 0
    %1033 = vmatpush2.bf16.msra.mxu0 %v383
    %1034 = vmatprep.subr.bf16.mxu0 0
    %1035 = vmatpush2.bf16.msra.mxu0 %v382
    %1036 = vmatprep.subr.bf16.mxu0 0
    %1037 = vmatpush2.bf16.msra.mxu0 %v381
    %1038 = vmatprep.mubr.bf16.mxu0 %v1005
    %1039 = vmatmul.mubr.bf16.gmra.mxu0 %v962
    %v1040 = vpop.f32.mrf.mxu0
    %v1041 = vadd.f32 0.0, %v1040
    %v1042 = vpop.f32.mrf.mxu0
    %v1043 = vpop.f32.mrf.mxu0
    %v1044 = vpop.f32.mrf.mxu0
    %1045 = vdwg.mxu0
    %v1046 = vadd.f32 %v449, %v1041
    %v1047 = vmax.f32 %v1046, 0.0
    %v1048 = vpack.c.bf16 %v815, %v815
    %1049 = vmatprep.subr.bf16.mxu0 0
    %1050 = vmatpush1.bf16.msra.mxu0 %v612
    %1051 = vmatprep.subr.bf16.mxu0 0
    %1052 = vmatpush1.bf16.msra.mxu0 %v611
    %1053 = vmatprep.subr.bf16.mxu0 0
    %1054 = vmatpush1.bf16.msra.mxu0 %v610
    %1055 = vmatprep.subr.bf16.mxu0 0
    %1056 = vmatpush1.bf16.msra.mxu0 %v609
    %1057 = vmatprep.subr.bf16.mxu0 0
    %1058 = vmatpush1.bf16.msra.mxu0 %v608
    %1059 = vmatprep.subr.bf16.mxu0 0
    %1060 = vmatpush1.bf16.msra.mxu0 %v607
    %1061 = vmatprep.subr.bf16.mxu0 0
    %1062 = vmatpush1.bf16.msra.mxu0 %v606
    %1063 = vmatprep.subr.bf16.mxu0 0
    %1064 = vmatpush1.bf16.msra.mxu0 %v605
    %1065 = vmatprep.subr.bf16.mxu0 0
    %1066 = vmatpush2.bf16.msra.mxu0 %v620
    %1067 = vmatprep.subr.bf16.mxu0 0
    %1068 = vmatpush2.bf16.msra.mxu0 %v619
    %1069 = vmatprep.subr.bf16.mxu0 0
    %1070 = vmatpush2.bf16.msra.mxu0 %v618
    %1071 = vmatprep.subr.bf16.mxu0 0
    %1072 = vmatpush2.bf16.msra.mxu0 %v617
    %1073 = vmatprep.subr.bf16.mxu0 0
    %1074 = vmatpush2.bf16.msra.mxu0 %v616
    %1075 = vmatprep.subr.bf16.mxu0 0
    %1076 = vmatpush2.bf16.msra.mxu0 %v615
    %1077 = vmatprep.subr.bf16.mxu0 0
    %1078 = vmatpush2.bf16.msra.mxu0 %v614
    %1079 = vmatprep.subr.bf16.mxu0 0
    %1080 = vmatpush2.bf16.msra.mxu0 %v613
    %1081 = vmatprep.mubr.bf16.mxu0 %v1048
    %1082 = vmatmul.mubr.bf16.gmra.mxu0 %v1005
    %v1083 = vpop.f32.mrf.mxu0
    %v1084 = vadd.f32 0.0, %v1083
    %v1085 = vpop.f32.mrf.mxu0
    %v1086 = vpop.f32.mrf.mxu0
    %v1087 = vpop.f32.mrf.mxu0
    %1088 = vdwg.mxu0
    %v1089 = vadd.f32 %v681, %v1084
    %v1090 = vmax.f32 %v1089, 0.0
    %v1091 = vpack.c.bf16 %v959, %v959
    %1092 = vmatprep.subr.bf16.mxu0 0
    %1093 = vmatpush1.bf16.msra.mxu0 %v887
    %1094 = vmatprep.subr.bf16.mxu0 0
    %1095 = vmatpush1.bf16.msra.mxu0 %v886
    %1096 = vmatprep.subr.bf16.mxu0 0
    %1097 = vmatpush1.bf16.msra.mxu0 %v885
    %1098 = vmatprep.subr.bf16.mxu0 0
    %1099 = vmatpush1.bf16.msra.mxu0 %v884
    %1100 = vmatprep.subr.bf16.mxu0 0
    %1101 = vmatpush1.bf16.msra.mxu0 %v883
    %1102 = vmatprep.subr.bf16.mxu0 0
    %1103 = vmatpush1.bf16.msra.mxu0 %v882
    %1104 = vmatprep.subr.bf16.mxu0 0
    %1105 = vmatpush1.bf16.msra.mxu0 %v881
    %1106 = vmatprep.subr.bf16.mxu0 0
    %1107 = vmatpush1.bf16.msra.mxu0 %v880
    %1108 = vmatprep.subr.bf16.mxu0 0
    %1109 = vmatpush2.bf16.msra.mxu0 %v895
    %1110 = vmatprep.subr.bf16.mxu0 0
    %1111 = vmatpush2.bf16.msra.mxu0 %v894
    %1112 = vmatprep.subr.bf16.mxu0 0
    %1113 = vmatpush2.bf16.msra.mxu0 %v893
    %1114 = vmatprep.subr.bf16.mxu0 0
    %1115 = vmatpush2.bf16.msra.mxu0 %v892
    %1116 = vmatprep.subr.bf16.mxu0 0
    %1117 = vmatpush2.bf16.msra.mxu0 %v891
    %1118 = vmatprep.subr.bf16.mxu0 0
    %1119 = vmatpush2.bf16.msra.mxu0 %v890
    %1120 = vmatprep.subr.bf16.mxu0 0
    %1121 = vmatpush2.bf16.msra.mxu0 %v889
    %1122 = vmatprep.subr.bf16.mxu0 0
    %1123 = vmatpush2.bf16.msra.mxu0 %v888
    %1124 = vmatprep.mubr.bf16.mxu0 %v1091
    %1125 = vmatmul.mubr.bf16.gmra.mxu0 %v1048
    %v1126 = vpop.f32.mrf.mxu0
    %v1127 = vadd.f32 0.0, %v1126
    %v1128 = vpop.f32.mrf.mxu0
    %v1129 = vpop.f32.mrf.mxu0
    %v1130 = vpop.f32.mrf.mxu0
    %1131 = vdwg.mxu0
    %v1132 = vadd.f32 %v956, %v1127
    %v1133 = vmax.f32 %v1132, 0.0
    %s1134 = scalar_lea.vmem %s0, 10
    %v1135 = vld [vmem:[%s1134] sm:$0x3]
    %v1136 = vpack.c.bf16 %v1004, %v1004
    %1137 = vmatprep.subr.bf16.mxu0 0
    %1138 = vmatpush1.bf16.msra.mxu0 %v212
    %1139 = vmatprep.subr.bf16.mxu0 0
    %1140 = vmatpush1.bf16.msra.mxu0 %v211
    %1141 = vmatprep.subr.bf16.mxu0 0
    %1142 = vmatpush1.bf16.msra.mxu0 %v210
    %1143 = vmatprep.subr.bf16.mxu0 0
    %1144 = vmatpush1.bf16.msra.mxu0 %v209
    %1145 = vmatprep.subr.bf16.mxu0 0
    %1146 = vmatpush1.bf16.msra.mxu0 %v208
    %1147 = vmatprep.subr.bf16.mxu0 0
    %1148 = vmatpush1.bf16.msra.mxu0 %v207
    %1149 = vmatprep.subr.bf16.mxu0 0
    %1150 = vmatpush1.bf16.msra.mxu0 %v206
    %1151 = vmatprep.subr.bf16.mxu0 0
    %1152 = vmatpush1.bf16.msra.mxu0 %v205
    %1153 = vmatprep.subr.bf16.mxu0 0
    %1154 = vmatpush2.bf16.msra.mxu0 0
    %1155 = vmatprep.subr.bf16.mxu0 0
    %1156 = vmatpush2.bf16.msra.mxu0 0
    %1157 = vmatprep.subr.bf16.mxu0 0
    %1158 = vmatpush2.bf16.msra.mxu0 0
    %1159 = vmatprep.subr.bf16.mxu0 0
    %1160 = vmatpush2.bf16.msra.mxu0 0
    %1161 = vmatprep.subr.bf16.mxu0 0
    %1162 = vmatpush2.bf16.msra.mxu0 0
    %1163 = vmatprep.subr.bf16.mxu0 0
    %1164 = vmatpush2.bf16.msra.mxu0 0
    %1165 = vmatprep.subr.bf16.mxu0 0
    %1166 = vmatpush2.bf16.msra.mxu0 0
    %1167 = vmatprep.subr.bf16.mxu0 0
    %1168 = vmatpush2.bf16.msra.mxu0 0
    %1169 = vmatprep.mubr.bf16.mxu0 0
    %1170 = vmatmul.mubr.bf16.gmra.mxu0 %v1136
    %v1171 = vpop.f32.mrf.mxu0
    %v1172 = vadd.f32 0.0, %v1171
    %v1173 = vpop.f32.mrf.mxu0
    %v1174 = vpop.f32.mrf.mxu0
    %v1175 = vpop.f32.mrf.mxu0
    %1176 = vdwg.mxu0
    %v1177 = vadd.f32 %v1135, %v1172
    %v1178 = vmax.f32 %v1177, 0.0
    %v1179 = vpack.c.bf16 %v1047, %v1047
    %1180 = vmatprep.subr.bf16.mxu0 0
    %1181 = vmatpush1.bf16.msra.mxu0 %v380
    %1182 = vmatprep.subr.bf16.mxu0 0
    %1183 = vmatpush1.bf16.msra.mxu0 %v379
    %1184 = vmatprep.subr.bf16.mxu0 0
    %1185 = vmatpush1.bf16.msra.mxu0 %v378
    %1186 = vmatprep.subr.bf16.mxu0 0
    %1187 = vmatpush1.bf16.msra.mxu0 %v377
    %1188 = vmatprep.subr.bf16.mxu0 0
    %1189 = vmatpush1.bf16.msra.mxu0 %v376
    %1190 = vmatprep.subr.bf16.mxu0 0
    %1191 = vmatpush1.bf16.msra.mxu0 %v375
    %1192 = vmatprep.subr.bf16.mxu0 0
    %1193 = vmatpush1.bf16.msra.mxu0 %v374
    %1194 = vmatprep.subr.bf16.mxu0 0
    %1195 = vmatpush1.bf16.msra.mxu0 %v373
    %1196 = vmatprep.subr.bf16.mxu0 0
    %1197 = vmatpush2.bf16.msra.mxu0 %v388
    %1198 = vmatprep.subr.bf16.mxu0 0
    %1199 = vmatpush2.bf16.msra.mxu0 %v387
    %1200 = vmatprep.subr.bf16.mxu0 0
    %1201 = vmatpush2.bf16.msra.mxu0 %v386
    %1202 = vmatprep.subr.bf16.mxu0 0
    %1203 = vmatpush2.bf16.msra.mxu0 %v385
    %1204 = vmatprep.subr.bf16.mxu0 0
    %1205 = vmatpush2.bf16.msra.mxu0 %v384
    %1206 = vmatprep.subr.bf16.mxu0 0
    %1207 = vmatpush2.bf16.msra.mxu0 %v383
    %1208 = vmatprep.subr.bf16.mxu0 0
    %1209 = vmatpush2.bf16.msra.mxu0 %v382
    %1210 = vmatprep.subr.bf16.mxu0 0
    %1211 = vmatpush2.bf16.msra.mxu0 %v381
    %1212 = vmatprep.mubr.bf16.mxu0 %v1179
    %1213 = vmatmul.mubr.bf16.gmra.mxu0 %v1136
    %v1214 = vpop.f32.mrf.mxu0
    %v1215 = vadd.f32 0.0, %v1214
    %v1216 = vpop.f32.mrf.mxu0
    %v1217 = vpop.f32.mrf.mxu0
    %v1218 = vpop.f32.mrf.mxu0
    %1219 = vdwg.mxu0
    %v1220 = vadd.f32 %v449, %v1215
    %v1221 = vmax.f32 %v1220, 0.0
    %v1222 = vpack.c.bf16 %v1090, %v1090
    %1223 = vmatprep.subr.bf16.mxu0 0
    %1224 = vmatpush1.bf16.msra.mxu0 %v612
    %1225 = vmatprep.subr.bf16.mxu0 0
    %1226 = vmatpush1.bf16.msra.mxu0 %v611
    %1227 = vmatprep.subr.bf16.mxu0 0
    %1228 = vmatpush1.bf16.msra.mxu0 %v610
    %1229 = vmatprep.subr.bf16.mxu0 0
    %1230 = vmatpush1.bf16.msra.mxu0 %v609
    %1231 = vmatprep.subr.bf16.mxu0 0
    %1232 = vmatpush1.bf16.msra.mxu0 %v608
    %1233 = vmatprep.subr.bf16.mxu0 0
    %1234 = vmatpush1.bf16.msra.mxu0 %v607
    %1235 = vmatprep.subr.bf16.mxu0 0
    %1236 = vmatpush1.bf16.msra.mxu0 %v606
    %1237 = vmatprep.subr.bf16.mxu0 0
    %1238 = vmatpush1.bf16.msra.mxu0 %v605
    %1239 = vmatprep.subr.bf16.mxu0 0
    %1240 = vmatpush2.bf16.msra.mxu0 %v620
    %1241 = vmatprep.subr.bf16.mxu0 0
    %1242 = vmatpush2.bf16.msra.mxu0 %v619
    %1243 = vmatprep.subr.bf16.mxu0 0
    %1244 = vmatpush2.bf16.msra.mxu0 %v618
    %1245 = vmatprep.subr.bf16.mxu0 0
    %1246 = vmatpush2.bf16.msra.mxu0 %v617
    %1247 = vmatprep.subr.bf16.mxu0 0
    %1248 = vmatpush2.bf16.msra.mxu0 %v616
    %1249 = vmatprep.subr.bf16.mxu0 0
    %1250 = vmatpush2.bf16.msra.mxu0 %v615
    %1251 = vmatprep.subr.bf16.mxu0 0
    %1252 = vmatpush2.bf16.msra.mxu0 %v614
    %1253 = vmatprep.subr.bf16.mxu0 0
    %1254 = vmatpush2.bf16.msra.mxu0 %v613
    %1255 = vmatprep.mubr.bf16.mxu0 %v1222
    %1256 = vmatmul.mubr.bf16.gmra.mxu0 %v1179
    %v1257 = vpop.f32.mrf.mxu0
    %v1258 = vadd.f32 0.0, %v1257
    %v1259 = vpop.f32.mrf.mxu0
    %v1260 = vpop.f32.mrf.mxu0
    %v1261 = vpop.f32.mrf.mxu0
    %1262 = vdwg.mxu0
    %v1263 = vadd.f32 %v681, %v1258
    %v1264 = vmax.f32 %v1263, 0.0
    %v1265 = vpack.c.bf16 %v1133, %v1133
    %1266 = vmatprep.subr.bf16.mxu0 0
    %1267 = vmatpush1.bf16.msra.mxu0 %v887
    %1268 = vmatprep.subr.bf16.mxu0 0
    %1269 = vmatpush1.bf16.msra.mxu0 %v886
    %1270 = vmatprep.subr.bf16.mxu0 0
    %1271 = vmatpush1.bf16.msra.mxu0 %v885
    %1272 = vmatprep.subr.bf16.mxu0 0
    %1273 = vmatpush1.bf16.msra.mxu0 %v884
    %1274 = vmatprep.subr.bf16.mxu0 0
    %1275 = vmatpush1.bf16.msra.mxu0 %v883
    %1276 = vmatprep.subr.bf16.mxu0 0
    %1277 = vmatpush1.bf16.msra.mxu0 %v882
    %1278 = vmatprep.subr.bf16.mxu0 0
    %1279 = vmatpush1.bf16.msra.mxu0 %v881
    %1280 = vmatprep.subr.bf16.mxu0 0
    %1281 = vmatpush1.bf16.msra.mxu0 %v880
    %1282 = vmatprep.subr.bf16.mxu0 0
    %1283 = vmatpush2.bf16.msra.mxu0 %v895
    %1284 = vmatprep.subr.bf16.mxu0 0
    %1285 = vmatpush2.bf16.msra.mxu0 %v894
    %1286 = vmatprep.subr.bf16.mxu0 0
    %1287 = vmatpush2.bf16.msra.mxu0 %v893
    %1288 = vmatprep.subr.bf16.mxu0 0
    %1289 = vmatpush2.bf16.msra.mxu0 %v892
    %1290 = vmatprep.subr.bf16.mxu0 0
    %1291 = vmatpush2.bf16.msra.mxu0 %v891
    %1292 = vmatprep.subr.bf16.mxu0 0
    %1293 = vmatpush2.bf16.msra.mxu0 %v890
    %1294 = vmatprep.subr.bf16.mxu0 0
    %1295 = vmatpush2.bf16.msra.mxu0 %v889
    %1296 = vmatprep.subr.bf16.mxu0 0
    %1297 = vmatpush2.bf16.msra.mxu0 %v888
    %1298 = vmatprep.mubr.bf16.mxu0 %v1265
    %1299 = vmatmul.mubr.bf16.gmra.mxu0 %v1222
    %v1300 = vpop.f32.mrf.mxu0
    %v1301 = vadd.f32 0.0, %v1300
    %v1302 = vpop.f32.mrf.mxu0
    %v1303 = vpop.f32.mrf.mxu0
    %v1304 = vpop.f32.mrf.mxu0
    %1305 = vdwg.mxu0
    %v1306 = vadd.f32 %v956, %v1301
    %v1307 = vmax.f32 %v1306, 0.0
    %s1308 = scalar_lea.vmem %s0, 12
    %v1309 = vld [vmem:[%s1308] sm:$0x3]
    %v1310 = vpack.c.bf16 %v1178, %v1178
    %1311 = vmatprep.subr.bf16.mxu0 0
    %1312 = vmatpush1.bf16.msra.mxu0 %v212
    %1313 = vmatprep.subr.bf16.mxu0 0
    %1314 = vmatpush1.bf16.msra.mxu0 %v211
    %1315 = vmatprep.subr.bf16.mxu0 0
    %1316 = vmatpush1.bf16.msra.mxu0 %v210
    %1317 = vmatprep.subr.bf16.mxu0 0
    %1318 = vmatpush1.bf16.msra.mxu0 %v209
    %1319 = vmatprep.subr.bf16.mxu0 0
    %1320 = vmatpush1.bf16.msra.mxu0 %v208
    %1321 = vmatprep.subr.bf16.mxu0 0
    %1322 = vmatpush1.bf16.msra.mxu0 %v207
    %1323 = vmatprep.subr.bf16.mxu0 0
    %1324 = vmatpush1.bf16.msra.mxu0 %v206
    %1325 = vmatprep.subr.bf16.mxu0 0
    %1326 = vmatpush1.bf16.msra.mxu0 %v205
    %1327 = vmatprep.subr.bf16.mxu0 0
    %1328 = vmatpush2.bf16.msra.mxu0 0
    %1329 = vmatprep.subr.bf16.mxu0 0
    %1330 = vmatpush2.bf16.msra.mxu0 0
    %1331 = vmatprep.subr.bf16.mxu0 0
    %1332 = vmatpush2.bf16.msra.mxu0 0
    %1333 = vmatprep.subr.bf16.mxu0 0
    %1334 = vmatpush2.bf16.msra.mxu0 0
    %1335 = vmatprep.subr.bf16.mxu0 0
    %1336 = vmatpush2.bf16.msra.mxu0 0
    %1337 = vmatprep.subr.bf16.mxu0 0
    %1338 = vmatpush2.bf16.msra.mxu0 0
    %1339 = vmatprep.subr.bf16.mxu0 0
    %1340 = vmatpush2.bf16.msra.mxu0 0
    %1341 = vmatprep.subr.bf16.mxu0 0
    %1342 = vmatpush2.bf16.msra.mxu0 0
    %1343 = vmatprep.mubr.bf16.mxu0 0
    %1344 = vmatmul.mubr.bf16.gmra.mxu0 %v1310
    %v1345 = vpop.f32.mrf.mxu0
    %v1346 = vadd.f32 0.0, %v1345
    %v1347 = vpop.f32.mrf.mxu0
    %v1348 = vpop.f32.mrf.mxu0
    %v1349 = vpop.f32.mrf.mxu0
    %1350 = vdwg.mxu0
    %v1351 = vadd.f32 %v1309, %v1346
    %v1352 = vmax.f32 %v1351, 0.0
    %v1353 = vpack.c.bf16 %v1221, %v1221
    %1354 = vmatprep.subr.bf16.mxu0 0
    %1355 = vmatpush1.bf16.msra.mxu0 %v380
    %1356 = vmatprep.subr.bf16.mxu0 0
    %1357 = vmatpush1.bf16.msra.mxu0 %v379
    %1358 = vmatprep.subr.bf16.mxu0 0
    %1359 = vmatpush1.bf16.msra.mxu0 %v378
    %1360 = vmatprep.subr.bf16.mxu0 0
    %1361 = vmatpush1.bf16.msra.mxu0 %v377
    %1362 = vmatprep.subr.bf16.mxu0 0
    %1363 = vmatpush1.bf16.msra.mxu0 %v376
    %1364 = vmatprep.subr.bf16.mxu0 0
    %1365 = vmatpush1.bf16.msra.mxu0 %v375
    %1366 = vmatprep.subr.bf16.mxu0 0
    %1367 = vmatpush1.bf16.msra.mxu0 %v374
    %1368 = vmatprep.subr.bf16.mxu0 0
    %1369 = vmatpush1.bf16.msra.mxu0 %v373
    %1370 = vmatprep.subr.bf16.mxu0 0
    %1371 = vmatpush2.bf16.msra.mxu0 %v388
    %1372 = vmatprep.subr.bf16.mxu0 0
    %1373 = vmatpush2.bf16.msra.mxu0 %v387
    %1374 = vmatprep.subr.bf16.mxu0 0
    %1375 = vmatpush2.bf16.msra.mxu0 %v386
    %1376 = vmatprep.subr.bf16.mxu0 0
    %1377 = vmatpush2.bf16.msra.mxu0 %v385
    %1378 = vmatprep.subr.bf16.mxu0 0
    %1379 = vmatpush2.bf16.msra.mxu0 %v384
    %1380 = vmatprep.subr.bf16.mxu0 0
    %1381 = vmatpush2.bf16.msra.mxu0 %v383
    %1382 = vmatprep.subr.bf16.mxu0 0
    %1383 = vmatpush2.bf16.msra.mxu0 %v382
    %1384 = vmatprep.subr.bf16.mxu0 0
    %1385 = vmatpush2.bf16.msra.mxu0 %v381
    %1386 = vmatprep.mubr.bf16.mxu0 %v1353
    %1387 = vmatmul.mubr.bf16.gmra.mxu0 %v1310
    %v1388 = vpop.f32.mrf.mxu0
    %v1389 = vadd.f32 0.0, %v1388
    %v1390 = vpop.f32.mrf.mxu0
    %v1391 = vpop.f32.mrf.mxu0
    %v1392 = vpop.f32.mrf.mxu0
    %1393 = vdwg.mxu0
    %v1394 = vadd.f32 %v449, %v1389
    %v1395 = vmax.f32 %v1394, 0.0
    %v1396 = vpack.c.bf16 %v1264, %v1264
    %1397 = vmatprep.subr.bf16.mxu0 0
    %1398 = vmatpush1.bf16.msra.mxu0 %v612
    %1399 = vmatprep.subr.bf16.mxu0 0
    %1400 = vmatpush1.bf16.msra.mxu0 %v611
    %1401 = vmatprep.subr.bf16.mxu0 0
    %1402 = vmatpush1.bf16.msra.mxu0 %v610
    %1403 = vmatprep.subr.bf16.mxu0 0
    %1404 = vmatpush1.bf16.msra.mxu0 %v609
    %1405 = vmatprep.subr.bf16.mxu0 0
    %1406 = vmatpush1.bf16.msra.mxu0 %v608
    %1407 = vmatprep.subr.bf16.mxu0 0
    %1408 = vmatpush1.bf16.msra.mxu0 %v607
    %1409 = vmatprep.subr.bf16.mxu0 0
    %1410 = vmatpush1.bf16.msra.mxu0 %v606
    %1411 = vmatprep.subr.bf16.mxu0 0
    %1412 = vmatpush1.bf16.msra.mxu0 %v605
    %1413 = vmatprep.subr.bf16.mxu0 0
    %1414 = vmatpush2.bf16.msra.mxu0 %v620
    %1415 = vmatprep.subr.bf16.mxu0 0
    %1416 = vmatpush2.bf16.msra.mxu0 %v619
    %1417 = vmatprep.subr.bf16.mxu0 0
    %1418 = vmatpush2.bf16.msra.mxu0 %v618
    %1419 = vmatprep.subr.bf16.mxu0 0
    %1420 = vmatpush2.bf16.msra.mxu0 %v617
    %1421 = vmatprep.subr.bf16.mxu0 0
    %1422 = vmatpush2.bf16.msra.mxu0 %v616
    %1423 = vmatprep.subr.bf16.mxu0 0
    %1424 = vmatpush2.bf16.msra.mxu0 %v615
    %1425 = vmatprep.subr.bf16.mxu0 0
    %1426 = vmatpush2.bf16.msra.mxu0 %v614
    %1427 = vmatprep.subr.bf16.mxu0 0
    %1428 = vmatpush2.bf16.msra.mxu0 %v613
    %1429 = vmatprep.mubr.bf16.mxu0 %v1396
    %1430 = vmatmul.mubr.bf16.gmra.mxu0 %v1353
    %v1431 = vpop.f32.mrf.mxu0
    %v1432 = vadd.f32 0.0, %v1431
    %v1433 = vpop.f32.mrf.mxu0
    %v1434 = vpop.f32.mrf.mxu0
    %v1435 = vpop.f32.mrf.mxu0
    %1436 = vdwg.mxu0
    %v1437 = vadd.f32 %v681, %v1432
    %v1438 = vmax.f32 %v1437, 0.0
    %v1439 = vpack.c.bf16 %v1307, %v1307
    %1440 = vmatprep.subr.bf16.mxu0 0
    %1441 = vmatpush1.bf16.msra.mxu0 %v887
    %1442 = vmatprep.subr.bf16.mxu0 0
    %1443 = vmatpush1.bf16.msra.mxu0 %v886
    %1444 = vmatprep.subr.bf16.mxu0 0
    %1445 = vmatpush1.bf16.msra.mxu0 %v885
    %1446 = vmatprep.subr.bf16.mxu0 0
    %1447 = vmatpush1.bf16.msra.mxu0 %v884
    %1448 = vmatprep.subr.bf16.mxu0 0
    %1449 = vmatpush1.bf16.msra.mxu0 %v883
    %1450 = vmatprep.subr.bf16.mxu0 0
    %1451 = vmatpush1.bf16.msra.mxu0 %v882
    %1452 = vmatprep.subr.bf16.mxu0 0
    %1453 = vmatpush1.bf16.msra.mxu0 %v881
    %1454 = vmatprep.subr.bf16.mxu0 0
    %1455 = vmatpush1.bf16.msra.mxu0 %v880
    %1456 = vmatprep.subr.bf16.mxu0 0
    %1457 = vmatpush2.bf16.msra.mxu0 %v895
    %1458 = vmatprep.subr.bf16.mxu0 0
    %1459 = vmatpush2.bf16.msra.mxu0 %v894
    %1460 = vmatprep.subr.bf16.mxu0 0
    %1461 = vmatpush2.bf16.msra.mxu0 %v893
    %1462 = vmatprep.subr.bf16.mxu0 0
    %1463 = vmatpush2.bf16.msra.mxu0 %v892
    %1464 = vmatprep.subr.bf16.mxu0 0
    %1465 = vmatpush2.bf16.msra.mxu0 %v891
    %1466 = vmatprep.subr.bf16.mxu0 0
    %1467 = vmatpush2.bf16.msra.mxu0 %v890
    %1468 = vmatprep.subr.bf16.mxu0 0
    %1469 = vmatpush2.bf16.msra.mxu0 %v889
    %1470 = vmatprep.subr.bf16.mxu0 0
    %1471 = vmatpush2.bf16.msra.mxu0 %v888
    %1472 = vmatprep.mubr.bf16.mxu0 %v1439
    %1473 = vmatmul.mubr.bf16.gmra.mxu0 %v1396
    %v1474 = vpop.f32.mrf.mxu0
    %v1475 = vadd.f32 0.0, %v1474
    %v1476 = vpop.f32.mrf.mxu0
    %v1477 = vpop.f32.mrf.mxu0
    %v1478 = vpop.f32.mrf.mxu0
    %1479 = vdwg.mxu0
    %v1480 = vadd.f32 %v956, %v1475
    %v1481 = vmax.f32 %v1480, 0.0
    %s1482 = scalar_lea.vmem %s0, 14
    %v1483 = vld [vmem:[%s1482] sm:$0x3]
    %v1484 = vpack.c.bf16 %v1352, %v1352
    %1485 = vmatprep.subr.bf16.mxu0 0
    %1486 = vmatpush1.bf16.msra.mxu0 %v212
    %1487 = vmatprep.subr.bf16.mxu0 0
    %1488 = vmatpush1.bf16.msra.mxu0 %v211
    %1489 = vmatprep.subr.bf16.mxu0 0
    %1490 = vmatpush1.bf16.msra.mxu0 %v210
    %1491 = vmatprep.subr.bf16.mxu0 0
    %1492 = vmatpush1.bf16.msra.mxu0 %v209
    %1493 = vmatprep.subr.bf16.mxu0 0
    %1494 = vmatpush1.bf16.msra.mxu0 %v208
    %1495 = vmatprep.subr.bf16.mxu0 0
    %1496 = vmatpush1.bf16.msra.mxu0 %v207
    %1497 = vmatprep.subr.bf16.mxu0 0
    %1498 = vmatpush1.bf16.msra.mxu0 %v206
    %1499 = vmatprep.subr.bf16.mxu0 0
    %1500 = vmatpush1.bf16.msra.mxu0 %v205
    %1501 = vmatprep.subr.bf16.mxu0 0
    %1502 = vmatpush2.bf16.msra.mxu0 0
    %1503 = vmatprep.subr.bf16.mxu0 0
    %1504 = vmatpush2.bf16.msra.mxu0 0
    %1505 = vmatprep.subr.bf16.mxu0 0
    %1506 = vmatpush2.bf16.msra.mxu0 0
    %1507 = vmatprep.subr.bf16.mxu0 0
    %1508 = vmatpush2.bf16.msra.mxu0 0
    %1509 = vmatprep.subr.bf16.mxu0 0
    %1510 = vmatpush2.bf16.msra.mxu0 0
    %1511 = vmatprep.subr.bf16.mxu0 0
    %1512 = vmatpush2.bf16.msra.mxu0 0
    %1513 = vmatprep.subr.bf16.mxu0 0
    %1514 = vmatpush2.bf16.msra.mxu0 0
    %1515 = vmatprep.subr.bf16.mxu0 0
    %1516 = vmatpush2.bf16.msra.mxu0 0
    %1517 = vmatprep.mubr.bf16.mxu0 0
    %1518 = vmatmul.mubr.bf16.gmra.mxu0 %v1484
    %v1519 = vpop.f32.mrf.mxu0
    %v1520 = vadd.f32 0.0, %v1519
    %v1521 = vpop.f32.mrf.mxu0
    %v1522 = vpop.f32.mrf.mxu0
    %v1523 = vpop.f32.mrf.mxu0
    %1524 = vdwg.mxu0
    %v1525 = vadd.f32 %v1483, %v1520
    %v1526 = vmax.f32 %v1525, 0.0
    %v1527 = vpack.c.bf16 %v1395, %v1395
    %1528 = vmatprep.subr.bf16.mxu0 0
    %1529 = vmatpush1.bf16.msra.mxu0 %v380
    %1530 = vmatprep.subr.bf16.mxu0 0
    %1531 = vmatpush1.bf16.msra.mxu0 %v379
    %1532 = vmatprep.subr.bf16.mxu0 0
    %1533 = vmatpush1.bf16.msra.mxu0 %v378
    %1534 = vmatprep.subr.bf16.mxu0 0
    %1535 = vmatpush1.bf16.msra.mxu0 %v377
    %1536 = vmatprep.subr.bf16.mxu0 0
    %1537 = vmatpush1.bf16.msra.mxu0 %v376
    %1538 = vmatprep.subr.bf16.mxu0 0
    %1539 = vmatpush1.bf16.msra.mxu0 %v375
    %1540 = vmatprep.subr.bf16.mxu0 0
    %1541 = vmatpush1.bf16.msra.mxu0 %v374
    %1542 = vmatprep.subr.bf16.mxu0 0
    %1543 = vmatpush1.bf16.msra.mxu0 %v373
    %1544 = vmatprep.subr.bf16.mxu0 0
    %1545 = vmatpush2.bf16.msra.mxu0 %v388
    %1546 = vmatprep.subr.bf16.mxu0 0
    %1547 = vmatpush2.bf16.msra.mxu0 %v387
    %1548 = vmatprep.subr.bf16.mxu0 0
    %1549 = vmatpush2.bf16.msra.mxu0 %v386
    %1550 = vmatprep.subr.bf16.mxu0 0
    %1551 = vmatpush2.bf16.msra.mxu0 %v385
    %1552 = vmatprep.subr.bf16.mxu0 0
    %1553 = vmatpush2.bf16.msra.mxu0 %v384
    %1554 = vmatprep.subr.bf16.mxu0 0
    %1555 = vmatpush2.bf16.msra.mxu0 %v383
    %1556 = vmatprep.subr.bf16.mxu0 0
    %1557 = vmatpush2.bf16.msra.mxu0 %v382
    %1558 = vmatprep.subr.bf16.mxu0 0
    %1559 = vmatpush2.bf16.msra.mxu0 %v381
    %1560 = vmatprep.mubr.bf16.mxu0 %v1527
    %1561 = vmatmul.mubr.bf16.gmra.mxu0 %v1484
    %v1562 = vpop.f32.mrf.mxu0
    %v1563 = vadd.f32 0.0, %v1562
    %v1564 = vpop.f32.mrf.mxu0
    %v1565 = vpop.f32.mrf.mxu0
    %v1566 = vpop.f32.mrf.mxu0
    %1567 = vdwg.mxu0
    %v1568 = vadd.f32 %v449, %v1563
    %v1569 = vmax.f32 %v1568, 0.0
    %v1570 = vpack.c.bf16 %v1438, %v1438
    %1571 = vmatprep.subr.bf16.mxu0 0
    %1572 = vmatpush1.bf16.msra.mxu0 %v612
    %1573 = vmatprep.subr.bf16.mxu0 0
    %1574 = vmatpush1.bf16.msra.mxu0 %v611
    %1575 = vmatprep.subr.bf16.mxu0 0
    %1576 = vmatpush1.bf16.msra.mxu0 %v610
    %1577 = vmatprep.subr.bf16.mxu0 0
    %1578 = vmatpush1.bf16.msra.mxu0 %v609
    %1579 = vmatprep.subr.bf16.mxu0 0
    %1580 = vmatpush1.bf16.msra.mxu0 %v608
    %1581 = vmatprep.subr.bf16.mxu0 0
    %1582 = vmatpush1.bf16.msra.mxu0 %v607
    %1583 = vmatprep.subr.bf16.mxu0 0
    %1584 = vmatpush1.bf16.msra.mxu0 %v606
    %1585 = vmatprep.subr.bf16.mxu0 0
    %1586 = vmatpush1.bf16.msra.mxu0 %v605
    %1587 = vmatprep.subr.bf16.mxu0 0
    %1588 = vmatpush2.bf16.msra.mxu0 %v620
    %1589 = vmatprep.subr.bf16.mxu0 0
    %1590 = vmatpush2.bf16.msra.mxu0 %v619
    %1591 = vmatprep.subr.bf16.mxu0 0
    %1592 = vmatpush2.bf16.msra.mxu0 %v618
    %1593 = vmatprep.subr.bf16.mxu0 0
    %1594 = vmatpush2.bf16.msra.mxu0 %v617
    %1595 = vmatprep.subr.bf16.mxu0 0
    %1596 = vmatpush2.bf16.msra.mxu0 %v616
    %1597 = vmatprep.subr.bf16.mxu0 0
    %1598 = vmatpush2.bf16.msra.mxu0 %v615
    %1599 = vmatprep.subr.bf16.mxu0 0
    %1600 = vmatpush2.bf16.msra.mxu0 %v614
    %1601 = vmatprep.subr.bf16.mxu0 0
    %1602 = vmatpush2.bf16.msra.mxu0 %v613
    %1603 = vmatprep.mubr.bf16.mxu0 %v1570
    %1604 = vmatmul.mubr.bf16.gmra.mxu0 %v1527
    %v1605 = vpop.f32.mrf.mxu0
    %v1606 = vadd.f32 0.0, %v1605
    %v1607 = vpop.f32.mrf.mxu0
    %v1608 = vpop.f32.mrf.mxu0
    %v1609 = vpop.f32.mrf.mxu0
    %1610 = vdwg.mxu0
    %v1611 = vadd.f32 %v681, %v1606
    %v1612 = vmax.f32 %v1611, 0.0
    %v1613 = vpack.c.bf16 %v1481, %v1481
    %1614 = vmatprep.subr.bf16.mxu0 0
    %1615 = vmatpush1.bf16.msra.mxu0 %v887
    %1616 = vmatprep.subr.bf16.mxu0 0
    %1617 = vmatpush1.bf16.msra.mxu0 %v886
    %1618 = vmatprep.subr.bf16.mxu0 0
    %1619 = vmatpush1.bf16.msra.mxu0 %v885
    %1620 = vmatprep.subr.bf16.mxu0 0
    %1621 = vmatpush1.bf16.msra.mxu0 %v884
    %1622 = vmatprep.subr.bf16.mxu0 0
    %1623 = vmatpush1.bf16.msra.mxu0 %v883
    %1624 = vmatprep.subr.bf16.mxu0 0
    %1625 = vmatpush1.bf16.msra.mxu0 %v882
    %1626 = vmatprep.subr.bf16.mxu0 0
    %1627 = vmatpush1.bf16.msra.mxu0 %v881
    %1628 = vmatprep.subr.bf16.mxu0 0
    %1629 = vmatpush1.bf16.msra.mxu0 %v880
    %1630 = vmatprep.subr.bf16.mxu0 0
    %1631 = vmatpush2.bf16.msra.mxu0 %v895
    %1632 = vmatprep.subr.bf16.mxu0 0
    %1633 = vmatpush2.bf16.msra.mxu0 %v894
    %1634 = vmatprep.subr.bf16.mxu0 0
    %1635 = vmatpush2.bf16.msra.mxu0 %v893
    %1636 = vmatprep.subr.bf16.mxu0 0
    %1637 = vmatpush2.bf16.msra.mxu0 %v892
    %1638 = vmatprep.subr.bf16.mxu0 0
    %1639 = vmatpush2.bf16.msra.mxu0 %v891
    %1640 = vmatprep.subr.bf16.mxu0 0
    %1641 = vmatpush2.bf16.msra.mxu0 %v890
    %1642 = vmatprep.subr.bf16.mxu0 0
    %1643 = vmatpush2.bf16.msra.mxu0 %v889
    %1644 = vmatprep.subr.bf16.mxu0 0
    %1645 = vmatpush2.bf16.msra.mxu0 %v888
    %1646 = vmatprep.mubr.bf16.mxu0 %v1613
    %1647 = vmatmul.mubr.bf16.gmra.mxu0 %v1570
    %v1648 = vpop.f32.mrf.mxu0
    %v1649 = vadd.f32 0.0, %v1648
    %v1650 = vpop.f32.mrf.mxu0
    %v1651 = vpop.f32.mrf.mxu0
    %v1652 = vpop.f32.mrf.mxu0
    %1653 = vdwg.mxu0
    %v1654 = vadd.f32 %v956, %v1649
    %v1655 = vmax.f32 %v1654, 0.0
    %v1656 = vpack.c.bf16 %v1526, %v1526
    %v1657 = vpack.c.bf16 %v1569, %v1569
    %1658 = vmatprep.subr.bf16.mxu0 0
    %1659 = vmatpush1.bf16.msra.mxu0 %v380
    %1660 = vmatprep.subr.bf16.mxu0 0
    %1661 = vmatpush1.bf16.msra.mxu0 %v379
    %1662 = vmatprep.subr.bf16.mxu0 0
    %1663 = vmatpush1.bf16.msra.mxu0 %v378
    %1664 = vmatprep.subr.bf16.mxu0 0
    %1665 = vmatpush1.bf16.msra.mxu0 %v377
    %1666 = vmatprep.subr.bf16.mxu0 0
    %1667 = vmatpush1.bf16.msra.mxu0 %v376
    %1668 = vmatprep.subr.bf16.mxu0 0
    %1669 = vmatpush1.bf16.msra.mxu0 %v375
    %1670 = vmatprep.subr.bf16.mxu0 0
    %1671 = vmatpush1.bf16.msra.mxu0 %v374
    %1672 = vmatprep.subr.bf16.mxu0 0
    %1673 = vmatpush1.bf16.msra.mxu0 %v373
    %1674 = vmatprep.subr.bf16.mxu0 0
    %1675 = vmatpush2.bf16.msra.mxu0 %v388
    %1676 = vmatprep.subr.bf16.mxu0 0
    %1677 = vmatpush2.bf16.msra.mxu0 %v387
    %1678 = vmatprep.subr.bf16.mxu0 0
    %1679 = vmatpush2.bf16.msra.mxu0 %v386
    %1680 = vmatprep.subr.bf16.mxu0 0
    %1681 = vmatpush2.bf16.msra.mxu0 %v385
    %1682 = vmatprep.subr.bf16.mxu0 0
    %1683 = vmatpush2.bf16.msra.mxu0 %v384
    %1684 = vmatprep.subr.bf16.mxu0 0
    %1685 = vmatpush2.bf16.msra.mxu0 %v383
    %1686 = vmatprep.subr.bf16.mxu0 0
    %1687 = vmatpush2.bf16.msra.mxu0 %v382
    %1688 = vmatprep.subr.bf16.mxu0 0
    %1689 = vmatpush2.bf16.msra.mxu0 %v381
    %1690 = vmatprep.mubr.bf16.mxu0 %v1657
    %1691 = vmatmul.mubr.bf16.gmra.mxu0 %v1656
    %v1692 = vpop.f32.mrf.mxu0
    %v1693 = vadd.f32 0.0, %v1692
    %v1694 = vpop.f32.mrf.mxu0
    %v1695 = vpop.f32.mrf.mxu0
    %v1696 = vpop.f32.mrf.mxu0
    %1697 = vdwg.mxu0
    %v1698 = vadd.f32 %v449, %v1693
    %v1699 = vmax.f32 %v1698, 0.0
    %v1700 = vpack.c.bf16 %v1612, %v1612
    %1701 = vmatprep.subr.bf16.mxu0 0
    %1702 = vmatpush1.bf16.msra.mxu0 %v612
    %1703 = vmatprep.subr.bf16.mxu0 0
    %1704 = vmatpush1.bf16.msra.mxu0 %v611
    %1705 = vmatprep.subr.bf16.mxu0 0
    %1706 = vmatpush1.bf16.msra.mxu0 %v610
    %1707 = vmatprep.subr.bf16.mxu0 0
    %1708 = vmatpush1.bf16.msra.mxu0 %v609
    %1709 = vmatprep.subr.bf16.mxu0 0
    %1710 = vmatpush1.bf16.msra.mxu0 %v608
    %1711 = vmatprep.subr.bf16.mxu0 0
    %1712 = vmatpush1.bf16.msra.mxu0 %v607
    %1713 = vmatprep.subr.bf16.mxu0 0
    %1714 = vmatpush1.bf16.msra.mxu0 %v606
    %1715 = vmatprep.subr.bf16.mxu0 0
    %1716 = vmatpush1.bf16.msra.mxu0 %v605
    %1717 = vmatprep.subr.bf16.mxu0 0
    %1718 = vmatpush2.bf16.msra.mxu0 %v620
    %1719 = vmatprep.subr.bf16.mxu0 0
    %1720 = vmatpush2.bf16.msra.mxu0 %v619
    %1721 = vmatprep.subr.bf16.mxu0 0
    %1722 = vmatpush2.bf16.msra.mxu0 %v618
    %1723 = vmatprep.subr.bf16.mxu0 0
    %1724 = vmatpush2.bf16.msra.mxu0 %v617
    %1725 = vmatprep.subr.bf16.mxu0 0
    %1726 = vmatpush2.bf16.msra.mxu0 %v616
    %1727 = vmatprep.subr.bf16.mxu0 0
    %1728 = vmatpush2.bf16.msra.mxu0 %v615
    %1729 = vmatprep.subr.bf16.mxu0 0
    %1730 = vmatpush2.bf16.msra.mxu0 %v614
    %1731 = vmatprep.subr.bf16.mxu0 0
    %1732 = vmatpush2.bf16.msra.mxu0 %v613
    %1733 = vmatprep.mubr.bf16.mxu0 %v1700
    %1734 = vmatmul.mubr.bf16.gmra.mxu0 %v1657
    %v1735 = vpop.f32.mrf.mxu0
    %v1736 = vadd.f32 0.0, %v1735
    %v1737 = vpop.f32.mrf.mxu0
    %v1738 = vpop.f32.mrf.mxu0
    %v1739 = vpop.f32.mrf.mxu0
    %1740 = vdwg.mxu0
    %v1741 = vadd.f32 %v681, %v1736
    %v1742 = vmax.f32 %v1741, 0.0
    %v1743 = vpack.c.bf16 %v1655, %v1655
    %1744 = vmatprep.subr.bf16.mxu0 0
    %1745 = vmatpush1.bf16.msra.mxu0 %v887
    %1746 = vmatprep.subr.bf16.mxu0 0
    %1747 = vmatpush1.bf16.msra.mxu0 %v886
    %1748 = vmatprep.subr.bf16.mxu0 0
    %1749 = vmatpush1.bf16.msra.mxu0 %v885
    %1750 = vmatprep.subr.bf16.mxu0 0
    %1751 = vmatpush1.bf16.msra.mxu0 %v884
    %1752 = vmatprep.subr.bf16.mxu0 0
    %1753 = vmatpush1.bf16.msra.mxu0 %v883
    %1754 = vmatprep.subr.bf16.mxu0 0
    %1755 = vmatpush1.bf16.msra.mxu0 %v882
    %1756 = vmatprep.subr.bf16.mxu0 0
    %1757 = vmatpush1.bf16.msra.mxu0 %v881
    %1758 = vmatprep.subr.bf16.mxu0 0
    %1759 = vmatpush1.bf16.msra.mxu0 %v880
    %1760 = vmatprep.subr.bf16.mxu0 0
    %1761 = vmatpush2.bf16.msra.mxu0 %v895
    %1762 = vmatprep.subr.bf16.mxu0 0
    %1763 = vmatpush2.bf16.msra.mxu0 %v894
    %1764 = vmatprep.subr.bf16.mxu0 0
    %1765 = vmatpush2.bf16.msra.mxu0 %v893
    %1766 = vmatprep.subr.bf16.mxu0 0
    %1767 = vmatpush2.bf16.msra.mxu0 %v892
    %1768 = vmatprep.subr.bf16.mxu0 0
    %1769 = vmatpush2.bf16.msra.mxu0 %v891
    %1770 = vmatprep.subr.bf16.mxu0 0
    %1771 = vmatpush2.bf16.msra.mxu0 %v890
    %1772 = vmatprep.subr.bf16.mxu0 0
    %1773 = vmatpush2.bf16.msra.mxu0 %v889
    %1774 = vmatprep.subr.bf16.mxu0 0
    %1775 = vmatpush2.bf16.msra.mxu0 %v888
    %1776 = vmatprep.mubr.bf16.mxu0 %v1743
    %1777 = vmatmul.mubr.bf16.gmra.mxu0 %v1700
    %v1778 = vpop.f32.mrf.mxu0
    %v1779 = vadd.f32 0.0, %v1778
    %v1780 = vpop.f32.mrf.mxu0
    %v1781 = vpop.f32.mrf.mxu0
    %v1782 = vpop.f32.mrf.mxu0
    %1783 = vdwg.mxu0
    %v1784 = vadd.f32 %v956, %v1779
    %v1785 = vmax.f32 %v1784, 0.0
    %v1786 = vpack.c.bf16 %v1699, %v1699
    %v1787 = vpack.c.bf16 %v1742, %v1742
    %1788 = vmatprep.subr.bf16.mxu0 0
    %1789 = vmatpush1.bf16.msra.mxu0 %v612
    %1790 = vmatprep.subr.bf16.mxu0 0
    %1791 = vmatpush1.bf16.msra.mxu0 %v611
    %1792 = vmatprep.subr.bf16.mxu0 0
    %1793 = vmatpush1.bf16.msra.mxu0 %v610
    %1794 = vmatprep.subr.bf16.mxu0 0
    %1795 = vmatpush1.bf16.msra.mxu0 %v609
    %1796 = vmatprep.subr.bf16.mxu0 0
    %1797 = vmatpush1.bf16.msra.mxu0 %v608
    %1798 = vmatprep.subr.bf16.mxu0 0
    %1799 = vmatpush1.bf16.msra.mxu0 %v607
    %1800 = vmatprep.subr.bf16.mxu0 0
    %1801 = vmatpush1.bf16.msra.mxu0 %v606
    %1802 = vmatprep.subr.bf16.mxu0 0
    %1803 = vmatpush1.bf16.msra.mxu0 %v605
    %1804 = vmatprep.subr.bf16.mxu0 0
    %1805 = vmatpush2.bf16.msra.mxu0 %v620
    %1806 = vmatprep.subr.bf16.mxu0 0
    %1807 = vmatpush2.bf16.msra.mxu0 %v619
    %1808 = vmatprep.subr.bf16.mxu0 0
    %1809 = vmatpush2.bf16.msra.mxu0 %v618
    %1810 = vmatprep.subr.bf16.mxu0 0
    %1811 = vmatpush2.bf16.msra.mxu0 %v617
    %1812 = vmatprep.subr.bf16.mxu0 0
    %1813 = vmatpush2.bf16.msra.mxu0 %v616
    %1814 = vmatprep.subr.bf16.mxu0 0
    %1815 = vmatpush2.bf16.msra.mxu0 %v615
    %1816 = vmatprep.subr.bf16.mxu0 0
    %1817 = vmatpush2.bf16.msra.mxu0 %v614
    %1818 = vmatprep.subr.bf16.mxu0 0
    %1819 = vmatpush2.bf16.msra.mxu0 %v613
    %1820 = vmatprep.mubr.bf16.mxu0 %v1787
    %1821 = vmatmul.mubr.bf16.gmra.mxu0 %v1786
    %v1822 = vpop.f32.mrf.mxu0
    %v1823 = vadd.f32 0.0, %v1822
    %v1824 = vpop.f32.mrf.mxu0
    %v1825 = vpop.f32.mrf.mxu0
    %v1826 = vpop.f32.mrf.mxu0
    %1827 = vdwg.mxu0
    %v1828 = vadd.f32 %v681, %v1823
    %v1829 = vmax.f32 %v1828, 0.0
    %v1830 = vpack.c.bf16 %v1785, %v1785
    %1831 = vmatprep.subr.bf16.mxu0 0
    %1832 = vmatpush1.bf16.msra.mxu0 %v887
    %1833 = vmatprep.subr.bf16.mxu0 0
    %1834 = vmatpush1.bf16.msra.mxu0 %v886
    %1835 = vmatprep.subr.bf16.mxu0 0
    %1836 = vmatpush1.bf16.msra.mxu0 %v885
    %1837 = vmatprep.subr.bf16.mxu0 0
    %1838 = vmatpush1.bf16.msra.mxu0 %v884
    %1839 = vmatprep.subr.bf16.mxu0 0
    %1840 = vmatpush1.bf16.msra.mxu0 %v883
    %1841 = vmatprep.subr.bf16.mxu0 0
    %1842 = vmatpush1.bf16.msra.mxu0 %v882
    %1843 = vmatprep.subr.bf16.mxu0 0
    %1844 = vmatpush1.bf16.msra.mxu0 %v881
    %1845 = vmatprep.subr.bf16.mxu0 0
    %1846 = vmatpush1.bf16.msra.mxu0 %v880
    %1847 = vmatprep.subr.bf16.mxu0 0
    %1848 = vmatpush2.bf16.msra.mxu0 %v895
    %1849 = vmatprep.subr.bf16.mxu0 0
    %1850 = vmatpush2.bf16.msra.mxu0 %v894
    %1851 = vmatprep.subr.bf16.mxu0 0
    %1852 = vmatpush2.bf16.msra.mxu0 %v893
    %1853 = vmatprep.subr.bf16.mxu0 0
    %1854 = vmatpush2.bf16.msra.mxu0 %v892
    %1855 = vmatprep.subr.bf16.mxu0 0
    %1856 = vmatpush2.bf16.msra.mxu0 %v891
    %1857 = vmatprep.subr.bf16.mxu0 0
    %1858 = vmatpush2.bf16.msra.mxu0 %v890
    %1859 = vmatprep.subr.bf16.mxu0 0
    %1860 = vmatpush2.bf16.msra.mxu0 %v889
    %1861 = vmatprep.subr.bf16.mxu0 0
    %1862 = vmatpush2.bf16.msra.mxu0 %v888
    %1863 = vmatprep.mubr.bf16.mxu0 %v1830
    %1864 = vmatmul.mubr.bf16.gmra.mxu0 %v1787
    %v1865 = vpop.f32.mrf.mxu0
    %v1866 = vadd.f32 0.0, %v1865
    %v1867 = vpop.f32.mrf.mxu0
    %v1868 = vpop.f32.mrf.mxu0
    %v1869 = vpop.f32.mrf.mxu0
    %1870 = vdwg.mxu0
    %v1871 = vadd.f32 %v956, %v1866
    %v1872 = vmax.f32 %v1871, 0.0
    %v1873 = vpack.c.bf16 %v1829, %v1829
    %v1874 = vpack.c.bf16 %v1872, %v1872
    %1875 = vmatprep.subr.bf16.mxu0 0
    %1876 = vmatpush1.bf16.msra.mxu0 %v887
    %1877 = vmatprep.subr.bf16.mxu0 0
    %1878 = vmatpush1.bf16.msra.mxu0 %v886
    %1879 = vmatprep.subr.bf16.mxu0 0
    %1880 = vmatpush1.bf16.msra.mxu0 %v885
    %1881 = vmatprep.subr.bf16.mxu0 0
    %1882 = vmatpush1.bf16.msra.mxu0 %v884
    %1883 = vmatprep.subr.bf16.mxu0 0
    %1884 = vmatpush1.bf16.msra.mxu0 %v883
    %1885 = vmatprep.subr.bf16.mxu0 0
    %1886 = vmatpush1.bf16.msra.mxu0 %v882
    %1887 = vmatprep.subr.bf16.mxu0 0
    %1888 = vmatpush1.bf16.msra.mxu0 %v881
    %1889 = vmatprep.subr.bf16.mxu0 0
    %1890 = vmatpush1.bf16.msra.mxu0 %v880
    %1891 = vmatprep.subr.bf16.mxu0 0
    %1892 = vmatpush2.bf16.msra.mxu0 %v895
    %1893 = vmatprep.subr.bf16.mxu0 0
    %1894 = vmatpush2.bf16.msra.mxu0 %v894
    %1895 = vmatprep.subr.bf16.mxu0 0
    %1896 = vmatpush2.bf16.msra.mxu0 %v893
    %1897 = vmatprep.subr.bf16.mxu0 0
    %1898 = vmatpush2.bf16.msra.mxu0 %v892
    %1899 = vmatprep.subr.bf16.mxu0 0
    %1900 = vmatpush2.bf16.msra.mxu0 %v891
    %1901 = vmatprep.subr.bf16.mxu0 0
    %1902 = vmatpush2.bf16.msra.mxu0 %v890
    %1903 = vmatprep.subr.bf16.mxu0 0
    %1904 = vmatpush2.bf16.msra.mxu0 %v889
    %1905 = vmatprep.subr.bf16.mxu0 0
    %1906 = vmatpush2.bf16.msra.mxu0 %v888
    %1907 = vmatprep.mubr.bf16.mxu0 %v1874
    %1908 = vmatmul.mubr.bf16.gmra.mxu0 %v1873
    %v1909 = vpop.f32.mrf.mxu0
    %v1910 = vadd.f32 0.0, %v1909
    %v1911 = vpop.f32.mrf.mxu0
    %v1912 = vpop.f32.mrf.mxu0
    %v1913 = vpop.f32.mrf.mxu0
    %1914 = vdwg.mxu0
    %v1915 = vadd.f32 %v956, %v1910
    %v1916 = vmax.f32 %v1915, 0.0
    %v1917 = vadd.f32 %v1526, %v1699
    %v1918 = vadd.f32 %v1917, %v1829
    %v1919 = vadd.f32 %v1918, %v1916
    %v1920 = vmul.f32 %v1919, 0.25
    %v1921 = vld [vmem:[#allocation5] sm:$0xff]
    %v1922 = vld [vmem:[#allocation5 + $0x8] sm:$0xff]
    %v1923 = vld [vmem:[#allocation5 + $0x10] sm:$0xff]
    %v1924 = vld [vmem:[#allocation5 + $0x18] sm:$0xff]
    %v1925 = vld [vmem:[#allocation5 + $0x20] sm:$0xff]
    %v1926 = vld [vmem:[#allocation5 + $0x28] sm:$0xff]
    %v1927 = vld [vmem:[#allocation5 + $0x30] sm:$0xff]
    %v1928 = vld [vmem:[#allocation5 + $0x38] sm:$0xff]
    %v1929 = vld [vmem:[#allocation5 + $0x40] sm:$0xff]
    %v1930 = vld [vmem:[#allocation5 + $0x48] sm:$0xff]
    %v1931 = vld [vmem:[#allocation5 + $0x50] sm:$0xff]
    %v1932 = vld [vmem:[#allocation5 + $0x58] sm:$0xff]
    %v1933 = vld [vmem:[#allocation5 + $0x60] sm:$0xff]
    %v1934 = vld [vmem:[#allocation5 + $0x68] sm:$0xff]
    %v1935 = vld [vmem:[#allocation5 + $0x70] sm:$0xff]
    %v1936 = vld [vmem:[#allocation5 + $0x78] sm:$0xff]
    %v1937 = vld [vmem:[%s5] sm:$0x1]
    %v1939 = vlaneseq
    %v1940 = vshrl.u32 %v1939, 7
    %v1941 = vsub.s32 0, %v1940
    %v1942 = vrot.slane %v1937, %v1941
    %1944 = vmatprep.subr.mxu0 0.0
    %1945 = vmatpush1.msra.mxu0 %v1936
    %1946 = vmatprep.subr.mxu0 0.0
    %1947 = vmatpush1.msra.mxu0 %v1935
    %1948 = vmatprep.subr.mxu0 0.0
    %1949 = vmatpush1.msra.mxu0 %v1934
    %1950 = vmatprep.subr.mxu0 0.0
    %1951 = vmatpush1.msra.mxu0 %v1933
    %1952 = vmatprep.subr.mxu0 0.0
    %1953 = vmatpush1.msra.mxu0 %v1932
    %1954 = vmatprep.subr.mxu0 0.0
    %1955 = vmatpush1.msra.mxu0 %v1931
    %1956 = vmatprep.subr.mxu0 0.0
    %1957 = vmatpush1.msra.mxu0 %v1930
    %1958 = vmatprep.subr.mxu0 0.0
    %1959 = vmatpush1.msra.mxu0 %v1929
    %1960 = vmatprep.subr.mxu0 0.0
    %1961 = vmatpush1.msra.mxu0 %v1928
    %1962 = vmatprep.subr.mxu0 0.0
    %1963 = vmatpush1.msra.mxu0 %v1927
    %1964 = vmatprep.subr.mxu0 0.0
    %1965 = vmatpush1.msra.mxu0 %v1926
    %1966 = vmatprep.subr.mxu0 0.0
    %1967 = vmatpush1.msra.mxu0 %v1925
    %1968 = vmatprep.subr.mxu0 0.0
    %1969 = vmatpush1.msra.mxu0 %v1924
    %1970 = vmatprep.subr.mxu0 0.0
    %1971 = vmatpush1.msra.mxu0 %v1923
    %1972 = vmatprep.subr.mxu0 0.0
    %1973 = vmatpush1.msra.mxu0 %v1922
    %1974 = vmatprep.subr.mxu0 0.0
    %1975 = vmatpush1.msra.mxu0 %v1921
    %1976 = vmatprep.subr.mxu0 0.0
    %1977 = vmatpush2.msra.mxu0 0.0
    %1978 = vmatprep.subr.mxu0 0.0
    %1979 = vmatpush2.msra.mxu0 0.0
    %1980 = vmatprep.subr.mxu0 0.0
    %1981 = vmatpush2.msra.mxu0 0.0
    %1982 = vmatprep.subr.mxu0 0.0
    %1983 = vmatpush2.msra.mxu0 0.0
    %1984 = vmatprep.subr.mxu0 0.0
    %1985 = vmatpush2.msra.mxu0 0.0
    %1986 = vmatprep.subr.mxu0 0.0
    %1987 = vmatpush2.msra.mxu0 0.0
    %1988 = vmatprep.subr.mxu0 0.0
    %1989 = vmatpush2.msra.mxu0 0.0
    %1990 = vmatprep.subr.mxu0 0.0
    %1991 = vmatpush2.msra.mxu0 0.0
    %1992 = vmatprep.subr.mxu0 0.0
    %1993 = vmatpush2.msra.mxu0 0.0
    %1994 = vmatprep.subr.mxu0 0.0
    %1995 = vmatpush2.msra.mxu0 0.0
    %1996 = vmatprep.subr.mxu0 0.0
    %1997 = vmatpush2.msra.mxu0 0.0
    %1998 = vmatprep.subr.mxu0 0.0
    %1999 = vmatpush2.msra.mxu0 0.0
    %2000 = vmatprep.subr.mxu0 0.0
    %2001 = vmatpush2.msra.mxu0 0.0
    %2002 = vmatprep.subr.mxu0 0.0
    %2003 = vmatpush2.msra.mxu0 0.0
    %2004 = vmatprep.subr.mxu0 0.0
    %2005 = vmatpush2.msra.mxu0 0.0
    %2006 = vmatprep.subr.mxu0 0.0
    %2007 = vmatpush2.msra.mxu0 0.0
    %2008 = vmatprep.mubr.f32.mxu0 0.0
    %2009 = vmatmul.mubr.f32.gmra.mxu0 %v1920
    %v2010 = vpop.f32.mrf.mxu0
    %v2011 = vadd.f32 %v1942, %v2010
    %v2012 = vpop.f32.mrf.mxu0
    %2013 = vdwg.mxu0
    %2014 = vst [vmem:[#allocation7] sm:$0x3] %v2011
    // Predicated region
    $region34: #{run_model.1} parent=1 // pred_check
      _
    $region35: #{run_model.1} parent=1 // pred_check_branch
      %2016 = sbr.rel (0) target = $region37
    $region36: #{run_model.1} parent=1 // pred_region
      %s2018 = ssub.s32 32, 32
      %2019 = vsyncadd [#allocation4], %s2018
      %s2021 = sshll.u32 [#allocation7], 4
      %s2022 = int_to_ptr.vmem [resolvable:$true] %s2021
      %2024 = dma.vmem_to_hbm [thread:$0]  %s2022, 32, %s6, [#allocation4]
    $region37: #{run_model.1} parent=1 // pred_fallthru
      _
    // Predicated region
    $region38: #{run_model.1} parent=1 // pred_check
      _
    $region39: #{run_model.1} parent=1 // pred_check_branch
      %2026 = sbr.rel (0) target = $region41
    $region40: #{run_model.1} parent=1 // pred_region
      %2027 = dma.done [#allocation4], 32
    $region41: #{run_model.1} parent=1 // pred_fallthru
      _
    %2028 = vsyncpa [#allocation3], 1
    %2029 = vsyncpa [#allocation6], 1
    %2030 = vsyncpa [#allocation4], 1

</llo_original>
